<compile_context>
chip_gen: v6e
topology: v6e:2x2x1
jax: 0.10.0
libtpu: 0.0.40
codegen_flags: <defaults>
</compile_context>

<pallas_src>
import functools

import jax
import jax.numpy as jnp
from jax import lax
from jax.experimental import pallas as pl
from jax.experimental.pallas import tpu as pltpu


def _dot_t(a, b_mat):
    """a @ b_mat.T with f32 accumulation, no materialised transpose."""
    return lax.dot_general(
        a, b_mat, (((1,), (1,)), ((), ())), preferred_element_type=jnp.float32)


# ---------------------------------------------------------------------------
# Fused kernel: input projection + recurrence, one time chunk per grid step.
# ---------------------------------------------------------------------------
def _fused_lstm_kernel(x_ref, w_ref, b_ref, out_ref, hfin_ref, cfin_ref,
                       hx_sc, cx_sc, *, in_size, t_tile, batch_block):
    k = pl.program_id(1)                      # time-chunk index ("arbitrary")

    @pl.when(k == 0)
    def _init():
        hx_sc[...] = jnp.zeros_like(hx_sc)
        cx_sc[...] = jnp.zeros_like(cx_sc)

    # Shared-gate weight, loaded once per chunk and split on the lane axis.
    wx = w_ref[:, :in_size]                   # (C, I)
    wh = w_ref[:, in_size:]                   # (C, H)
    bias = b_ref[...]                         # (1, C)

    hx = hx_sc[...]                           # (BB, H) carry
    cx = cx_sc[...]                           # (BB, C) carry

    for t in range(t_tile):                   # statically unrolled, t_tile <= 8
        # Non-recurrent part (x_t @ Wx.T + b) does not depend on the carry,
        # so the scheduler overlaps it with the previous step's EUP chain.
        g = _dot_t(x_ref[t], wx) + bias + _dot_t(hx, wh)
        s = jax.nn.sigmoid(g)                 # f_gate == i_gate == o_gate
        c = jnp.tanh(g)                       # c_gate
        cx = (cx + c) * s                     # == cx*s + c*s (one fewer mul)
        hx = jnp.tanh(cx) * s
        # Lane-dense store: flatten (BB, C) -> (1, BB*C) by lane-concatenating
        # the BB rows, then store one full-width row of the (t_tile, BB*C)
        # output block (full 128 lanes at these shapes instead of 32/128).
        # TODO(synk): for large batch blocks switch this to a tiled relayout
        # reshape instead of a per-row concat.
        row = jnp.concatenate(
            [hx[i:i + 1, :] for i in range(batch_block)], axis=1)
        out_ref[pl.ds(t, 1), :] = row.astype(out_ref.dtype)

    hx_sc[...] = hx
    cx_sc[...] = cx

    @pl.when(k == pl.num_programs(1) - 1)
    def _finalize():
        hfin_ref[...] = hx.astype(hfin_ref.dtype)
        cfin_ref[...] = cx.astype(cfin_ref.dtype)


def _pick_time_tile(seq_len):
    # Cap the per-chunk unroll at 8 steps (review: avoid vreg spills from huge
    # unrolls) while keeping an (8, 128)-friendly output block shape.
    if seq_len % 8 == 0:
        return 8
    # Single full-length chunk is fine at the small sizes this script targets.
    return seq_len


def my_lstm_forward(x, w, b, hidden_size, cell_size):
    """x: (S, B, I) f32;  w: (cell_size, input_size + hidden_size);  b: (cell_size,)."""
    assert hidden_size == cell_size, (
        "PyTorch module only broadcasts correctly when hidden_size == cell_size")
    S, B, I = x.shape
    C, H = cell_size, hidden_size
    assert w.shape == (C, I + H) and b.shape == (C,)

    t_tile = _pick_time_tile(S)
    nk = S // t_tile
    bb = B           # one batch block at this toy batch size
    nb = B // bb     # (v7x: split into >=2 blocks when B allows a lane-dense split)

    b2 = b.reshape(1, C)

    kernel = functools.partial(
        _fused_lstm_kernel, in_size=I, t_tile=t_tile, batch_block=bb)

    out_flat, hfin, cfin = pl.pallas_call(
        kernel,
        out_shape=(
            jax.ShapeDtypeStruct((S, B * C), x.dtype),   # lane-dense hx stack
            jax.ShapeDtypeStruct((B, C), x.dtype),       # hx final
            jax.ShapeDtypeStruct((B, C), x.dtype),       # cx final
        ),
        grid_spec=pltpu.PrefetchScalarGridSpec(
            num_scalar_prefetch=0,
            grid=(nb, nk),                               # (batch, time) order
            in_specs=[
                pl.BlockSpec((t_tile, bb, I), lambda bi, k: (k, bi, 0)),
                pl.BlockSpec((C, I + H), lambda bi, k: (0, 0),
                             pipeline_mode=pl.Buffered(1)),   # grid-invariant
                pl.BlockSpec((1, C), lambda bi, k: (0, 0),
                             pipeline_mode=pl.Buffered(1)),   # grid-invariant
            ],
            out_specs=[
                pl.BlockSpec((t_tile, bb * C), lambda bi, k: (k, bi)),
                pl.BlockSpec((bb, C), lambda bi, k: (bi, 0)),
                pl.BlockSpec((bb, C), lambda bi, k: (bi, 0)),
            ],
            scratch_shapes=[
                pltpu.VMEM((bb, H), jnp.float32),        # hx carry
                pltpu.VMEM((bb, C), jnp.float32),        # cx carry
            ],
        ),
        compiler_params=pltpu.CompilerParams(
            dimension_semantics=("parallel", "arbitrary")),
    )(x, w, b2)

    out = out_flat.reshape(S, B, C)
    return out, (hfin, cfin)


# ---------------------------------------------------------------------------
# Pure-JAX reference mirroring the PyTorch forward exactly.
# ---------------------------------------------------------------------------
def my_lstm_reference(x, w, b):
    S, B, I = x.shape
    C = w.shape[0]

    def step(carry, x_t):
        hx, cx = carry
        combined = jnp.concatenate([x_t, hx], axis=1)
        g = combined @ w.T + b
        s = jax.nn.sigmoid(g)
        c = jnp.tanh(g)
        cx = cx * s + c * s
        hx = jnp.tanh(cx) * s
        return (hx, cx), hx

    h0 = jnp.zeros((B, C), x.dtype)
    (hx, cx), out = jax.lax.scan(step, (h0, h0), x)
    return out, (hx, cx)


if __name__ == "__main__":
    # Small shapes consistent with the module: seq=8, batch=4,
    # input_size=16, hidden_size=cell_size=32.
    S, B, I, H = 8, 4, 16, 32
    C = H

    key = jax.random.PRNGKey(0)
    kx, kw, kb = jax.random.split(key, 3)

    x = jax.random.normal(kx, (S, B, I), dtype=jnp.float32)

    # Deterministic nn.Linear-style init: U(-1/sqrt(fan_in), 1/sqrt(fan_in))
    fan_in = I + H
    bound = 1.0 / (fan_in ** 0.5)
    w = jax.random.uniform(kw, (C, fan_in), jnp.float32, -bound, bound)
    b = jax.random.uniform(kb, (C,), jnp.float32, -bound, bound)

    out, (hx, cx) = my_lstm_forward(x, w, b, H, C)
    jax.block_until_ready((out, hx, cx))

    out_ref, (hx_ref, cx_ref) = my_lstm_reference(x, w, b)
    assert out.shape == (S, B, C)
    assert jnp.allclose(out, out_ref, atol=1e-5, rtol=1e-5)
    assert jnp.allclose(hx, hx_ref, atol=1e-5, rtol=1e-5)
    assert jnp.allclose(cx, cx_ref, atol=1e-5, rtol=1e-5)

    print("KERNEL_OK")
</pallas_src>

<mosaic_0001>
module attributes {stable_mosaic.version = 11 : i64} {
  func.func @_fused_lstm_kernel(%arg0: i32, %arg1: i32, %arg2: memref<8x4x16xf32, #tpu.memory_space<vmem>>, %arg3: memref<32x48xf32, #tpu.memory_space<vmem>>, %arg4: memref<1x32xf32, #tpu.memory_space<vmem>>, %arg5: memref<8x128xf32, #tpu.memory_space<vmem>>, %arg6: memref<4x32xf32, #tpu.memory_space<vmem>>, %arg7: memref<4x32xf32, #tpu.memory_space<vmem>>, %arg8: memref<4x32xf32, #tpu.memory_space<vmem>>, %arg9: memref<4x32xf32, #tpu.memory_space<vmem>>) attributes {dimension_semantics = [#tpu.dimension_semantics<parallel>, #tpu.dimension_semantics<arbitrary>], iteration_bounds = array<i64: 1, 1>, scalar_prefetch = 0 : i64, scratch_operands = 2 : i64, tpu.core_type = #tpu.core_type<tc>, window_params = [{transform_indices = @transform_0, window_bounds = array<i64: 8, 4, 16>}, {pipeline_mode = #tpu.pipeline_mode<synchronous>, transform_indices = @transform_1, window_bounds = array<i64: 32, 48>}, {pipeline_mode = #tpu.pipeline_mode<synchronous>, transform_indices = @transform_2, window_bounds = array<i64: 1, 32>}, {transform_indices = @transform_3, window_bounds = array<i64: 8, 128>}, {transform_indices = @transform_4, window_bounds = array<i64: 4, 32>}, {transform_indices = @transform_5, window_bounds = array<i64: 4, 32>}]} {
    %c0_i32 = arith.constant 0 : i32
    %0 = arith.cmpi eq, %arg1, %c0_i32 : i32
    %1 = arith.extui %0 : i1 to i32
    %c0_i32_0 = arith.constant 0 : i32
    %2 = arith.cmpi ne, %1, %c0_i32_0 : i32
    scf.if %2 {
      %cst_71 = arith.constant 0.000000e+00 : f32
      %197 = vector.broadcast %cst_71 : f32 to vector<4x32xf32>
      %c0_72 = arith.constant 0 : index
      %c0_73 = arith.constant 0 : index
      %198 = vector.load %arg8[%c0_72, %c0_73] : memref<4x32xf32, #tpu.memory_space<vmem>>, vector<4x32xf32>
      tpu.vector_store %arg8[%c0_72, %c0_73], %197 {strides = array<i32>} : memref<4x32xf32, #tpu.memory_space<vmem>>, vector<4x32xf32>,
      %cst_74 = arith.constant 0.000000e+00 : f32
      %199 = vector.broadcast %cst_74 : f32 to vector<4x32xf32>
      %c0_75 = arith.constant 0 : index
      %c0_76 = arith.constant 0 : index
      %200 = vector.load %arg9[%c0_75, %c0_76] : memref<4x32xf32, #tpu.memory_space<vmem>>, vector<4x32xf32>
      tpu.vector_store %arg9[%c0_75, %c0_76], %199 {strides = array<i32>} : memref<4x32xf32, #tpu.memory_space<vmem>>, vector<4x32xf32>,
    } else {
    }
    %c0 = arith.constant 0 : index
    %c0_1 = arith.constant 0 : index
    %3 = vector.load %arg3[%c0, %c0_1] : memref<32x48xf32, #tpu.memory_space<vmem>>, vector<32x16xf32>
    %c0_2 = arith.constant 0 : index
    %c16 = arith.constant 16 : index
    %4 = vector.load %arg3[%c0_2, %c16] : memref<32x48xf32, #tpu.memory_space<vmem>>, vector<32x32xf32>
    %c0_3 = arith.constant 0 : index
    %c0_4 = arith.constant 0 : index
    %5 = vector.load %arg4[%c0_3, %c0_4] : memref<1x32xf32, #tpu.memory_space<vmem>>, vector<1x32xf32>
    %c0_5 = arith.constant 0 : index
    %c0_6 = arith.constant 0 : index
    %6 = vector.load %arg8[%c0_5, %c0_6] : memref<4x32xf32, #tpu.memory_space<vmem>>, vector<4x32xf32>
    %c0_7 = arith.constant 0 : index
    %c0_8 = arith.constant 0 : index
    %7 = vector.load %arg9[%c0_7, %c0_8] : memref<4x32xf32, #tpu.memory_space<vmem>>, vector<4x32xf32>
    %c0_9 = arith.constant 0 : index
    %c0_10 = arith.constant 0 : index
    %c0_11 = arith.constant 0 : index
    %8 = vector.load %arg2[%c0_9, %c0_10, %c0_11] : memref<8x4x16xf32, #tpu.memory_space<vmem>>, vector<1x4x16xf32>
    %9 = vector.shape_cast %8 : vector<1x4x16xf32> to vector<4x16xf32>
    %cst = arith.constant dense<0.000000e+00> : vector<4x32xf32>
    %10 = tpu.matmul %9, %3, %cst {dimension_numbers = #tpu.dot_dimension_numbers<[1], [1], [0], [0], [0, 0, 1, 0], [], []>} : vector<4x16xf32>, vector<32x16xf32>, vector<4x32xf32> -> vector<4x32xf32>
    %11 = vector.broadcast %5 : vector<1x32xf32> to vector<4x32xf32>
    %12 = arith.addf %10, %11 : vector<4x32xf32>
    %cst_12 = arith.constant dense<0.000000e+00> : vector<4x32xf32>
    %13 = tpu.matmul %6, %4, %cst_12 {dimension_numbers = #tpu.dot_dimension_numbers<[1], [1], [0], [0], [0, 0, 1, 0], [], []>} : vector<4x32xf32>, vector<32x32xf32>, vector<4x32xf32> -> vector<4x32xf32>
    %14 = arith.addf %12, %13 : vector<4x32xf32>
    %15 = arith.negf %14 : vector<4x32xf32>
    %16 = math.exp %15 : vector<4x32xf32>
    %cst_13 = arith.constant 1.000000e+00 : f32
    %17 = vector.broadcast %cst_13 : f32 to vector<4x32xf32>
    %18 = arith.addf %17, %16 : vector<4x32xf32>
    %19 = arith.divf %17, %18 : vector<4x32xf32>
    %20 = math.tanh %14 : vector<4x32xf32>
    %21 = arith.addf %7, %20 : vector<4x32xf32>
    %22 = arith.mulf %21, %19 : vector<4x32xf32>
    %23 = math.tanh %22 : vector<4x32xf32>
    %24 = arith.mulf %23, %19 : vector<4x32xf32>
    %25 = vector.extract_strided_slice %24 {offsets = [0, 0], sizes = [1, 32], strides = [1, 1]} : vector<4x32xf32> to vector<1x32xf32>
    %26 = vector.extract_strided_slice %24 {offsets = [1, 0], sizes = [1, 32], strides = [1, 1]} : vector<4x32xf32> to vector<1x32xf32>
    %27 = vector.extract_strided_slice %24 {offsets = [2, 0], sizes = [1, 32], strides = [1, 1]} : vector<4x32xf32> to vector<1x32xf32>
    %28 = vector.extract_strided_slice %24 {offsets = [3, 0], sizes = [1, 32], strides = [1, 1]} : vector<4x32xf32> to vector<1x32xf32>
    %29 = tpu.concatenate %25, %26, %27, %28 in 1 : vector<1x32xf32>, vector<1x32xf32>, vector<1x32xf32>, vector<1x32xf32> -> vector<1x128xf32>
    %c0_14 = arith.constant 0 : index
    %c0_15 = arith.constant 0 : index
    %30 = vector.load %arg5[%c0_14, %c0_15] : memref<8x128xf32, #tpu.memory_space<vmem>>, vector<1x128xf32>
    tpu.vector_store %arg5[%c0_14, %c0_15], %29 {strides = array<i32>} : memref<8x128xf32, #tpu.memory_space<vmem>>, vector<1x128xf32>,
    %c1 = arith.constant 1 : index
    %c0_16 = arith.constant 0 : index
    %c0_17 = arith.constant 0 : index
    %31 = vector.load %arg2[%c1, %c0_16, %c0_17] : memref<8x4x16xf32, #tpu.memory_space<vmem>>, vector<1x4x16xf32>
    %32 = vector.shape_cast %31 : vector<1x4x16xf32> to vector<4x16xf32>
    %cst_18 = arith.constant dense<0.000000e+00> : vector<4x32xf32>
    %33 = tpu.matmul %32, %3, %cst_18 {dimension_numbers = #tpu.dot_dimension_numbers<[1], [1], [0], [0], [0, 0, 1, 0], [], []>} : vector<4x16xf32>, vector<32x16xf32>, vector<4x32xf32> -> vector<4x32xf32>
    %34 = vector.broadcast %5 : vector<1x32xf32> to vector<4x32xf32>
    %35 = arith.addf %33, %34 : vector<4x32xf32>
    %cst_19 = arith.constant dense<0.000000e+00> : vector<4x32xf32>
    %36 = tpu.matmul %24, %4, %cst_19 {dimension_numbers = #tpu.dot_dimension_numbers<[1], [1], [0], [0], [0, 0, 1, 0], [], []>} : vector<4x32xf32>, vector<32x32xf32>, vector<4x32xf32> -> vector<4x32xf32>
    %37 = arith.addf %35, %36 : vector<4x32xf32>
    %38 = arith.negf %37 : vector<4x32xf32>
    %39 = math.exp %38 : vector<4x32xf32>
    %cst_20 = arith.constant 1.000000e+00 : f32
    %40 = vector.broadcast %cst_20 : f32 to vector<4x32xf32>
    %41 = arith.addf %40, %39 : vector<4x32xf32>
    %42 = arith.divf %40, %41 : vector<4x32xf32>
    %43 = math.tanh %37 : vector<4x32xf32>
    %44 = arith.addf %22, %43 : vector<4x32xf32>
    %45 = arith.mulf %44, %42 : vector<4x32xf32>
    %46 = math.tanh %45 : vector<4x32xf32>
    %47 = arith.mulf %46, %42 : vector<4x32xf32>
    %48 = vector.extract_strided_slice %47 {offsets = [0, 0], sizes = [1, 32], strides = [1, 1]} : vector<4x32xf32> to vector<1x32xf32>
    %49 = vector.extract_strided_slice %47 {offsets = [1, 0], sizes = [1, 32], strides = [1, 1]} : vector<4x32xf32> to vector<1x32xf32>
    %50 = vector.extract_strided_slice %47 {offsets = [2, 0], sizes = [1, 32], strides = [1, 1]} : vector<4x32xf32> to vector<1x32xf32>
    %51 = vector.extract_strided_slice %47 {offsets = [3, 0], sizes = [1, 32], strides = [1, 1]} : vector<4x32xf32> to vector<1x32xf32>
    %52 = tpu.concatenate %48, %49, %50, %51 in 1 : vector<1x32xf32>, vector<1x32xf32>, vector<1x32xf32>, vector<1x32xf32> -> vector<1x128xf32>
    %c1_21 = arith.constant 1 : index
    %c0_22 = arith.constant 0 : index
    %53 = vector.load %arg5[%c1_21, %c0_22] : memref<8x128xf32, #tpu.memory_space<vmem>>, vector<1x128xf32>
    tpu.vector_store %arg5[%c1_21, %c0_22], %52 {strides = array<i32>} : memref<8x128xf32, #tpu.memory_space<vmem>>, vector<1x128xf32>,
    %c2 = arith.constant 2 : index
    %c0_23 = arith.constant 0 : index
    %c0_24 = arith.constant 0 : index
    %54 = vector.load %arg2[%c2, %c0_23, %c0_24] : memref<8x4x16xf32, #tpu.memory_space<vmem>>, vector<1x4x16xf32>
    %55 = vector.shape_cast %54 : vector<1x4x16xf32> to vector<4x16xf32>
    %cst_25 = arith.constant dense<0.000000e+00> : vector<4x32xf32>
    %56 = tpu.matmul %55, %3, %cst_25 {dimension_numbers = #tpu.dot_dimension_numbers<[1], [1], [0], [0], [0, 0, 1, 0], [], []>} : vector<4x16xf32>, vector<32x16xf32>, vector<4x32xf32> -> vector<4x32xf32>
    %57 = vector.broadcast %5 : vector<1x32xf32> to vector<4x32xf32>
    %58 = arith.addf %56, %57 : vector<4x32xf32>
    %cst_26 = arith.constant dense<0.000000e+00> : vector<4x32xf32>
    %59 = tpu.matmul %47, %4, %cst_26 {dimension_numbers = #tpu.dot_dimension_numbers<[1], [1], [0], [0], [0, 0, 1, 0], [], []>} : vector<4x32xf32>, vector<32x32xf32>, vector<4x32xf32> -> vector<4x32xf32>
    %60 = arith.addf %58, %59 : vector<4x32xf32>
    %61 = arith.negf %60 : vector<4x32xf32>
    %62 = math.exp %61 : vector<4x32xf32>
    %cst_27 = arith.constant 1.000000e+00 : f32
    %63 = vector.broadcast %cst_27 : f32 to vector<4x32xf32>
    %64 = arith.addf %63, %62 : vector<4x32xf32>
    %65 = arith.divf %63, %64 : vector<4x32xf32>
    %66 = math.tanh %60 : vector<4x32xf32>
    %67 = arith.addf %45, %66 : vector<4x32xf32>
    %68 = arith.mulf %67, %65 : vector<4x32xf32>
    %69 = math.tanh %68 : vector<4x32xf32>
    %70 = arith.mulf %69, %65 : vector<4x32xf32>
    %71 = vector.extract_strided_slice %70 {offsets = [0, 0], sizes = [1, 32], strides = [1, 1]} : vector<4x32xf32> to vector<1x32xf32>
    %72 = vector.extract_strided_slice %70 {offsets = [1, 0], sizes = [1, 32], strides = [1, 1]} : vector<4x32xf32> to vector<1x32xf32>
    %73 = vector.extract_strided_slice %70 {offsets = [2, 0], sizes = [1, 32], strides = [1, 1]} : vector<4x32xf32> to vector<1x32xf32>
    %74 = vector.extract_strided_slice %70 {offsets = [3, 0], sizes = [1, 32], strides = [1, 1]} : vector<4x32xf32> to vector<1x32xf32>
    %75 = tpu.concatenate %71, %72, %73, %74 in 1 : vector<1x32xf32>, vector<1x32xf32>, vector<1x32xf32>, vector<1x32xf32> -> vector<1x128xf32>
    %c2_28 = arith.constant 2 : index
    %c0_29 = arith.constant 0 : index
    %76 = vector.load %arg5[%c2_28, %c0_29] : memref<8x128xf32, #tpu.memory_space<vmem>>, vector<1x128xf32>
    tpu.vector_store %arg5[%c2_28, %c0_29], %75 {strides = array<i32>} : memref<8x128xf32, #tpu.memory_space<vmem>>, vector<1x128xf32>,
    %c3 = arith.constant 3 : index
    %c0_30 = arith.constant 0 : index
    %c0_31 = arith.constant 0 : index
    %77 = vector.load %arg2[%c3, %c0_30, %c0_31] : memref<8x4x16xf32, #tpu.memory_space<vmem>>, vector<1x4x16xf32>
    %78 = vector.shape_cast %77 : vector<1x4x16xf32> to vector<4x16xf32>
    %cst_32 = arith.constant dense<0.000000e+00> : vector<4x32xf32>
    %79 = tpu.matmul %78, %3, %cst_32 {dimension_numbers = #tpu.dot_dimension_numbers<[1], [1], [0], [0], [0, 0, 1, 0], [], []>} : vector<4x16xf32>, vector<32x16xf32>, vector<4x32xf32> -> vector<4x32xf32>
    %80 = vector.broadcast %5 : vector<1x32xf32> to vector<4x32xf32>
    %81 = arith.addf %79, %80 : vector<4x32xf32>
    %cst_33 = arith.constant dense<0.000000e+00> : vector<4x32xf32>
    %82 = tpu.matmul %70, %4, %cst_33 {dimension_numbers = #tpu.dot_dimension_numbers<[1], [1], [0], [0], [0, 0, 1, 0], [], []>} : vector<4x32xf32>, vector<32x32xf32>, vector<4x32xf32> -> vector<4x32xf32>
    %83 = arith.addf %81, %82 : vector<4x32xf32>
    %84 = arith.negf %83 : vector<4x32xf32>
    %85 = math.exp %84 : vector<4x32xf32>
    %cst_34 = arith.constant 1.000000e+00 : f32
    %86 = vector.broadcast %cst_34 : f32 to vector<4x32xf32>
    %87 = arith.addf %86, %85 : vector<4x32xf32>
    %88 = arith.divf %86, %87 : vector<4x32xf32>
    %89 = math.tanh %83 : vector<4x32xf32>
    %90 = arith.addf %68, %89 : vector<4x32xf32>
    %91 = arith.mulf %90, %88 : vector<4x32xf32>
    %92 = math.tanh %91 : vector<4x32xf32>
    %93 = arith.mulf %92, %88 : vector<4x32xf32>
    %94 = vector.extract_strided_slice %93 {offsets = [0, 0], sizes = [1, 32], strides = [1, 1]} : vector<4x32xf32> to vector<1x32xf32>
    %95 = vector.extract_strided_slice %93 {offsets = [1, 0], sizes = [1, 32], strides = [1, 1]} : vector<4x32xf32> to vector<1x32xf32>
    %96 = vector.extract_strided_slice %93 {offsets = [2, 0], sizes = [1, 32], strides = [1, 1]} : vector<4x32xf32> to vector<1x32xf32>
    %97 = vector.extract_strided_slice %93 {offsets = [3, 0], sizes = [1, 32], strides = [1, 1]} : vector<4x32xf32> to vector<1x32xf32>
    %98 = tpu.concatenate %94, %95, %96, %97 in 1 : vector<1x32xf32>, vector<1x32xf32>, vector<1x32xf32>, vector<1x32xf32> -> vector<1x128xf32>
    %c3_35 = arith.constant 3 : index
    %c0_36 = arith.constant 0 : index
    %99 = vector.load %arg5[%c3_35, %c0_36] : memref<8x128xf32, #tpu.memory_space<vmem>>, vector<1x128xf32>
    tpu.vector_store %arg5[%c3_35, %c0_36], %98 {strides = array<i32>} : memref<8x128xf32, #tpu.memory_space<vmem>>, vector<1x128xf32>,
    %c4 = arith.constant 4 : index
    %c0_37 = arith.constant 0 : index
    %c0_38 = arith.constant 0 : index
    %100 = vector.load %arg2[%c4, %c0_37, %c0_38] : memref<8x4x16xf32, #tpu.memory_space<vmem>>, vector<1x4x16xf32>
    %101 = vector.shape_cast %100 : vector<1x4x16xf32> to vector<4x16xf32>
    %cst_39 = arith.constant dense<0.000000e+00> : vector<4x32xf32>
    %102 = tpu.matmul %101, %3, %cst_39 {dimension_numbers = #tpu.dot_dimension_numbers<[1], [1], [0], [0], [0, 0, 1, 0], [], []>} : vector<4x16xf32>, vector<32x16xf32>, vector<4x32xf32> -> vector<4x32xf32>
    %103 = vector.broadcast %5 : vector<1x32xf32> to vector<4x32xf32>
    %104 = arith.addf %102, %103 : vector<4x32xf32>
    %cst_40 = arith.constant dense<0.000000e+00> : vector<4x32xf32>
    %105 = tpu.matmul %93, %4, %cst_40 {dimension_numbers = #tpu.dot_dimension_numbers<[1], [1], [0], [0], [0, 0, 1, 0], [], []>} : vector<4x32xf32>, vector<32x32xf32>, vector<4x32xf32> -> vector<4x32xf32>
    %106 = arith.addf %104, %105 : vector<4x32xf32>
    %107 = arith.negf %106 : vector<4x32xf32>
    %108 = math.exp %107 : vector<4x32xf32>
    %cst_41 = arith.constant 1.000000e+00 : f32
    %109 = vector.broadcast %cst_41 : f32 to vector<4x32xf32>
    %110 = arith.addf %109, %108 : vector<4x32xf32>
    %111 = arith.divf %109, %110 : vector<4x32xf32>
    %112 = math.tanh %106 : vector<4x32xf32>
    %113 = arith.addf %91, %112 : vector<4x32xf32>
    %114 = arith.mulf %113, %111 : vector<4x32xf32>
    %115 = math.tanh %114 : vector<4x32xf32>
    %116 = arith.mulf %115, %111 : vector<4x32xf32>
    %117 = vector.extract_strided_slice %116 {offsets = [0, 0], sizes = [1, 32], strides = [1, 1]} : vector<4x32xf32> to vector<1x32xf32>
    %118 = vector.extract_strided_slice %116 {offsets = [1, 0], sizes = [1, 32], strides = [1, 1]} : vector<4x32xf32> to vector<1x32xf32>
    %119 = vector.extract_strided_slice %116 {offsets = [2, 0], sizes = [1, 32], strides = [1, 1]} : vector<4x32xf32> to vector<1x32xf32>
    %120 = vector.extract_strided_slice %116 {offsets = [3, 0], sizes = [1, 32], strides = [1, 1]} : vector<4x32xf32> to vector<1x32xf32>
    %121 = tpu.concatenate %117, %118, %119, %120 in 1 : vector<1x32xf32>, vector<1x32xf32>, vector<1x32xf32>, vector<1x32xf32> -> vector<1x128xf32>
    %c4_42 = arith.constant 4 : index
    %c0_43 = arith.constant 0 : index
    %122 = vector.load %arg5[%c4_42, %c0_43] : memref<8x128xf32, #tpu.memory_space<vmem>>, vector<1x128xf32>
    tpu.vector_store %arg5[%c4_42, %c0_43], %121 {strides = array<i32>} : memref<8x128xf32, #tpu.memory_space<vmem>>, vector<1x128xf32>,
    %c5 = arith.constant 5 : index
    %c0_44 = arith.constant 0 : index
    %c0_45 = arith.constant 0 : index
    %123 = vector.load %arg2[%c5, %c0_44, %c0_45] : memref<8x4x16xf32, #tpu.memory_space<vmem>>, vector<1x4x16xf32>
    %124 = vector.shape_cast %123 : vector<1x4x16xf32> to vector<4x16xf32>
    %cst_46 = arith.constant dense<0.000000e+00> : vector<4x32xf32>
    %125 = tpu.matmul %124, %3, %cst_46 {dimension_numbers = #tpu.dot_dimension_numbers<[1], [1], [0], [0], [0, 0, 1, 0], [], []>} : vector<4x16xf32>, vector<32x16xf32>, vector<4x32xf32> -> vector<4x32xf32>
    %126 = vector.broadcast %5 : vector<1x32xf32> to vector<4x32xf32>
    %127 = arith.addf %125, %126 : vector<4x32xf32>
    %cst_47 = arith.constant dense<0.000000e+00> : vector<4x32xf32>
    %128 = tpu.matmul %116, %4, %cst_47 {dimension_numbers = #tpu.dot_dimension_numbers<[1], [1], [0], [0], [0, 0, 1, 0], [], []>} : vector<4x32xf32>, vector<32x32xf32>, vector<4x32xf32> -> vector<4x32xf32>
    %129 = arith.addf %127, %128 : vector<4x32xf32>
    %130 = arith.negf %129 : vector<4x32xf32>
    %131 = math.exp %130 : vector<4x32xf32>
    %cst_48 = arith.constant 1.000000e+00 : f32
    %132 = vector.broadcast %cst_48 : f32 to vector<4x32xf32>
    %133 = arith.addf %132, %131 : vector<4x32xf32>
    %134 = arith.divf %132, %133 : vector<4x32xf32>
    %135 = math.tanh %129 : vector<4x32xf32>
    %136 = arith.addf %114, %135 : vector<4x32xf32>
    %137 = arith.mulf %136, %134 : vector<4x32xf32>
    %138 = math.tanh %137 : vector<4x32xf32>
    %139 = arith.mulf %138, %134 : vector<4x32xf32>
    %140 = vector.extract_strided_slice %139 {offsets = [0, 0], sizes = [1, 32], strides = [1, 1]} : vector<4x32xf32> to vector<1x32xf32>
    %141 = vector.extract_strided_slice %139 {offsets = [1, 0], sizes = [1, 32], strides = [1, 1]} : vector<4x32xf32> to vector<1x32xf32>
    %142 = vector.extract_strided_slice %139 {offsets = [2, 0], sizes = [1, 32], strides = [1, 1]} : vector<4x32xf32> to vector<1x32xf32>
    %143 = vector.extract_strided_slice %139 {offsets = [3, 0], sizes = [1, 32], strides = [1, 1]} : vector<4x32xf32> to vector<1x32xf32>
    %144 = tpu.concatenate %140, %141, %142, %143 in 1 : vector<1x32xf32>, vector<1x32xf32>, vector<1x32xf32>, vector<1x32xf32> -> vector<1x128xf32>
    %c5_49 = arith.constant 5 : index
    %c0_50 = arith.constant 0 : index
    %145 = vector.load %arg5[%c5_49, %c0_50] : memref<8x128xf32, #tpu.memory_space<vmem>>, vector<1x128xf32>
    tpu.vector_store %arg5[%c5_49, %c0_50], %144 {strides = array<i32>} : memref<8x128xf32, #tpu.memory_space<vmem>>, vector<1x128xf32>,
    %c6 = arith.constant 6 : index
    %c0_51 = arith.constant 0 : index
    %c0_52 = arith.constant 0 : index
    %146 = vector.load %arg2[%c6, %c0_51, %c0_52] : memref<8x4x16xf32, #tpu.memory_space<vmem>>, vector<1x4x16xf32>
    %147 = vector.shape_cast %146 : vector<1x4x16xf32> to vector<4x16xf32>
    %cst_53 = arith.constant dense<0.000000e+00> : vector<4x32xf32>
    %148 = tpu.matmul %147, %3, %cst_53 {dimension_numbers = #tpu.dot_dimension_numbers<[1], [1], [0], [0], [0, 0, 1, 0], [], []>} : vector<4x16xf32>, vector<32x16xf32>, vector<4x32xf32> -> vector<4x32xf32>
    %149 = vector.broadcast %5 : vector<1x32xf32> to vector<4x32xf32>
    %150 = arith.addf %148, %149 : vector<4x32xf32>
    %cst_54 = arith.constant dense<0.000000e+00> : vector<4x32xf32>
    %151 = tpu.matmul %139, %4, %cst_54 {dimension_numbers = #tpu.dot_dimension_numbers<[1], [1], [0], [0], [0, 0, 1, 0], [], []>} : vector<4x32xf32>, vector<32x32xf32>, vector<4x32xf32> -> vector<4x32xf32>
    %152 = arith.addf %150, %151 : vector<4x32xf32>
    %153 = arith.negf %152 : vector<4x32xf32>
    %154 = math.exp %153 : vector<4x32xf32>
    %cst_55 = arith.constant 1.000000e+00 : f32
    %155 = vector.broadcast %cst_55 : f32 to vector<4x32xf32>
    %156 = arith.addf %155, %154 : vector<4x32xf32>
    %157 = arith.divf %155, %156 : vector<4x32xf32>
    %158 = math.tanh %152 : vector<4x32xf32>
    %159 = arith.addf %137, %158 : vector<4x32xf32>
    %160 = arith.mulf %159, %157 : vector<4x32xf32>
    %161 = math.tanh %160 : vector<4x32xf32>
    %162 = arith.mulf %161, %157 : vector<4x32xf32>
    %163 = vector.extract_strided_slice %162 {offsets = [0, 0], sizes = [1, 32], strides = [1, 1]} : vector<4x32xf32> to vector<1x32xf32>
    %164 = vector.extract_strided_slice %162 {offsets = [1, 0], sizes = [1, 32], strides = [1, 1]} : vector<4x32xf32> to vector<1x32xf32>
    %165 = vector.extract_strided_slice %162 {offsets = [2, 0], sizes = [1, 32], strides = [1, 1]} : vector<4x32xf32> to vector<1x32xf32>
    %166 = vector.extract_strided_slice %162 {offsets = [3, 0], sizes = [1, 32], strides = [1, 1]} : vector<4x32xf32> to vector<1x32xf32>
    %167 = tpu.concatenate %163, %164, %165, %166 in 1 : vector<1x32xf32>, vector<1x32xf32>, vector<1x32xf32>, vector<1x32xf32> -> vector<1x128xf32>
    %c6_56 = arith.constant 6 : index
    %c0_57 = arith.constant 0 : index
    %168 = vector.load %arg5[%c6_56, %c0_57] : memref<8x128xf32, #tpu.memory_space<vmem>>, vector<1x128xf32>
    tpu.vector_store %arg5[%c6_56, %c0_57], %167 {strides = array<i32>} : memref<8x128xf32, #tpu.memory_space<vmem>>, vector<1x128xf32>,
    %c7 = arith.constant 7 : index
    %c0_58 = arith.constant 0 : index
    %c0_59 = arith.constant 0 : index
    %169 = vector.load %arg2[%c7, %c0_58, %c0_59] : memref<8x4x16xf32, #tpu.memory_space<vmem>>, vector<1x4x16xf32>
    %170 = vector.shape_cast %169 : vector<1x4x16xf32> to vector<4x16xf32>
    %cst_60 = arith.constant dense<0.000000e+00> : vector<4x32xf32>
    %171 = tpu.matmul %170, %3, %cst_60 {dimension_numbers = #tpu.dot_dimension_numbers<[1], [1], [0], [0], [0, 0, 1, 0], [], []>} : vector<4x16xf32>, vector<32x16xf32>, vector<4x32xf32> -> vector<4x32xf32>
    %172 = vector.broadcast %5 : vector<1x32xf32> to vector<4x32xf32>
    %173 = arith.addf %171, %172 : vector<4x32xf32>
    %cst_61 = arith.constant dense<0.000000e+00> : vector<4x32xf32>
    %174 = tpu.matmul %162, %4, %cst_61 {dimension_numbers = #tpu.dot_dimension_numbers<[1], [1], [0], [0], [0, 0, 1, 0], [], []>} : vector<4x32xf32>, vector<32x32xf32>, vector<4x32xf32> -> vector<4x32xf32>
    %175 = arith.addf %173, %174 : vector<4x32xf32>
    %176 = arith.negf %175 : vector<4x32xf32>
    %177 = math.exp %176 : vector<4x32xf32>
    %cst_62 = arith.constant 1.000000e+00 : f32
    %178 = vector.broadcast %cst_62 : f32 to vector<4x32xf32>
    %179 = arith.addf %178, %177 : vector<4x32xf32>
    %180 = arith.divf %178, %179 : vector<4x32xf32>
    %181 = math.tanh %175 : vector<4x32xf32>
    %182 = arith.addf %160, %181 : vector<4x32xf32>
    %183 = arith.mulf %182, %180 : vector<4x32xf32>
    %184 = math.tanh %183 : vector<4x32xf32>
    %185 = arith.mulf %184, %180 : vector<4x32xf32>
    %186 = vector.extract_strided_slice %185 {offsets = [0, 0], sizes = [1, 32], strides = [1, 1]} : vector<4x32xf32> to vector<1x32xf32>
    %187 = vector.extract_strided_slice %185 {offsets = [1, 0], sizes = [1, 32], strides = [1, 1]} : vector<4x32xf32> to vector<1x32xf32>
    %188 = vector.extract_strided_slice %185 {offsets = [2, 0], sizes = [1, 32], strides = [1, 1]} : vector<4x32xf32> to vector<1x32xf32>
    %189 = vector.extract_strided_slice %185 {offsets = [3, 0], sizes = [1, 32], strides = [1, 1]} : vector<4x32xf32> to vector<1x32xf32>
    %190 = tpu.concatenate %186, %187, %188, %189 in 1 : vector<1x32xf32>, vector<1x32xf32>, vector<1x32xf32>, vector<1x32xf32> -> vector<1x128xf32>
    %c7_63 = arith.constant 7 : index
    %c0_64 = arith.constant 0 : index
    %191 = vector.load %arg5[%c7_63, %c0_64] : memref<8x128xf32, #tpu.memory_space<vmem>>, vector<1x128xf32>
    tpu.vector_store %arg5[%c7_63, %c0_64], %190 {strides = array<i32>} : memref<8x128xf32, #tpu.memory_space<vmem>>, vector<1x128xf32>,
    %c0_65 = arith.constant 0 : index
    %c0_66 = arith.constant 0 : index
    %192 = vector.load %arg8[%c0_65, %c0_66] : memref<4x32xf32, #tpu.memory_space<vmem>>, vector<4x32xf32>
    tpu.vector_store %arg8[%c0_65, %c0_66], %185 {strides = array<i32>} : memref<4x32xf32, #tpu.memory_space<vmem>>, vector<4x32xf32>,
    %c0_67 = arith.constant 0 : index
    %c0_68 = arith.constant 0 : index
    %193 = vector.load %arg9[%c0_67, %c0_68] : memref<4x32xf32, #tpu.memory_space<vmem>>, vector<4x32xf32>
    tpu.vector_store %arg9[%c0_67, %c0_68], %183 {strides = array<i32>} : memref<4x32xf32, #tpu.memory_space<vmem>>, vector<4x32xf32>,
    %c0_i32_69 = arith.constant 0 : i32
    %194 = arith.cmpi eq, %arg1, %c0_i32_69 : i32
    %195 = arith.extui %194 : i1 to i32
    %c0_i32_70 = arith.constant 0 : i32
    %196 = arith.cmpi ne, %195, %c0_i32_70 : i32
    scf.if %196 {
      %c0_71 = arith.constant 0 : index
      %c0_72 = arith.constant 0 : index
      %197 = vector.load %arg6[%c0_71, %c0_72] : memref<4x32xf32, #tpu.memory_space<vmem>>, vector<4x32xf32>
      tpu.vector_store %arg6[%c0_71, %c0_72], %185 {strides = array<i32>} : memref<4x32xf32, #tpu.memory_space<vmem>>, vector<4x32xf32>,
      %c0_73 = arith.constant 0 : index
      %c0_74 = arith.constant 0 : index
      %198 = vector.load %arg7[%c0_73, %c0_74] : memref<4x32xf32, #tpu.memory_space<vmem>>, vector<4x32xf32>
      tpu.vector_store %arg7[%c0_73, %c0_74], %183 {strides = array<i32>} : memref<4x32xf32, #tpu.memory_space<vmem>>, vector<4x32xf32>,
    } else {
    }
    return
  }
  func.func @transform_0(%arg0: i32, %arg1: i32) -> (i32, i32, i32) {
    %c0_i32 = arith.constant 0 : i32
    %c0_i32_0 = arith.constant 0 : i32
    return %arg1, %arg0, %c0_i32 : i32, i32, i32
  }
  func.func @transform_1(%arg0: i32, %arg1: i32) -> (i32, i32) {
    %c0_i32 = arith.constant 0 : i32
    %c0_i32_0 = arith.constant 0 : i32
    %c0_i32_1 = arith.constant 0 : i32
    return %c0_i32, %c0_i32_0 : i32, i32
  }
  func.func @transform_2(%arg0: i32, %arg1: i32) -> (i32, i32) {
    %c0_i32 = arith.constant 0 : i32
    %c0_i32_0 = arith.constant 0 : i32
    %c0_i32_1 = arith.constant 0 : i32
    return %c0_i32, %c0_i32_0 : i32, i32
  }
  func.func @transform_3(%arg0: i32, %arg1: i32) -> (i32, i32) {
    %c0_i32 = arith.constant 0 : i32
    return %arg1, %arg0 : i32, i32
  }
  func.func @transform_4(%arg0: i32, %arg1: i32) -> (i32, i32) {
    %c0_i32 = arith.constant 0 : i32
    %c0_i32_0 = arith.constant 0 : i32
    return %arg0, %c0_i32 : i32, i32
  }
  func.func @transform_5(%arg0: i32, %arg1: i32) -> (i32, i32) {
    %c0_i32 = arith.constant 0 : i32
    %c0_i32_0 = arith.constant 0 : i32
    return %arg0, %c0_i32 : i32, i32
  }
}

</mosaic_0001>

<llo_original>
// kernel: tpu_custom_call.1
$region0: #{tpu_custom_call.1}
  #allocation0 [shape = 'u32[]', space=smem, size = 0x4, offset = 0x4, fixed_abs, tag = 'smem constant byte address 0x4 - core index']
  #allocation1 [shape = 'u32[144,128]{1,0:T(1,128)}', space=vmem, size = 0x12000, scoped, tag = 'internal scratch']
  #allocation2 [shape = 'f32[4,32]{1,0:T(4,128)}', space=vmem, size = 0x800, scoped, tag = 'scratch operand']
  #allocation3 [shape = 'f32[4,32]{1,0:T(4,128)}', space=vmem, size = 0x800, scoped, tag = 'scratch operand']
  %s0 = inlined_call_operand.hbm [shape: f32[8,4,16], index: 0, kind: input, shape index: {}]
  %s1 = inlined_call_operand.hbm [shape: f32[32,48], index: 1, kind: input, shape index: {}]
  %s2 = inlined_call_operand.vmem [shape: f32[1,32], index: 2, kind: input, shape index: {}]
  %s3 = inlined_call_operand.hbm [shape: f32[8,128], index: 3, kind: output, shape index: {0}]
  %s4 = inlined_call_operand.hbm [shape: f32[4,32], index: 4, kind: output, shape index: {1}]
  %s5 = inlined_call_operand.hbm [shape: f32[4,32], index: 5, kind: output, shape index: {2}]
  %6 = xla_tuple %s3, %s4, %s5
  %s7 = sld [smem:[#allocation0]]
  $region54: #{tpu_custom_call.1} parent=0
    _
  %s9 = ssub.s32 1, %s7
  %s10 = scalar_select 0, %s9, %s7
  $region1: #{tpu_custom_call.1} parent=0
    #allocation4 [shape = 'u8[16384]{0}', space=vmem, size = 0x4000, scoped, tag = 'input window, operand 0, single buffered']
    #allocation5 [shape = 's32[1]{0}', space=sflag, size = 0x4, scoped, tag = 'scoped memory for tpu_custom_call.1']
    #allocation6 [shape = 's32[1]{0}', space=sflag, size = 0x4, scoped, tag = 'scoped memory for tpu_custom_call.1']
    #allocation7 [shape = 'u8[16384]{0}', space=vmem, size = 0x4000, scoped, tag = 'input window, operand 1, single buffered']
    #allocation8 [shape = 's32[1]{0}', space=sflag, size = 0x4, scoped, tag = 'scoped memory for tpu_custom_call.1']
    #allocation9 [shape = 'u8[4096]{0}', space=vmem, size = 0x1000, scoped, tag = 'output window, operand 0, single buffered']
    #allocation10 [shape = 'u8[2048]{0}', space=vmem, size = 0x800, scoped, tag = 'output window, operand 1, single buffered']
    #allocation11 [shape = 's32[1]{0}', space=sflag, size = 0x4, scoped, tag = 'scoped memory for tpu_custom_call.1']
    #allocation12 [shape = 'u8[2048]{0}', space=vmem, size = 0x800, scoped, tag = 'output window, operand 2, single buffered']
    %11 = vsyncpa [#allocation5], 0
    %12 = vsyncpa [#allocation8], 0
    %13 = vsyncpa [#allocation6], 0
    %14 = vsyncpa [#allocation11], 0
    // Predicated region
    $region2: #{tpu_custom_call.1} parent=1 // pred_check
      _
    $region3: #{tpu_custom_call.1} parent=1 // pred_check_branch
      %16 = sbr.rel (0) target = $region5
    $region4: #{tpu_custom_call.1} parent=1 // pred_region
      %s18 = ssub.s32 512, 512
      %19 = vsyncadd [#allocation5], %s18
      %s20 = sshll.u32 [#allocation4], 4
      %s21 = int_to_ptr.vmem [resolvable:$true] %s20
      %26 = dma.hbm_to_vmem [thread:$0]  %s0, 512, %s21, [#allocation5], 64, 64, 4
    $region5: #{tpu_custom_call.1} parent=1 // pred_fallthru
      _
    // Predicated region
    $region6: #{tpu_custom_call.1} parent=1 // pred_check
      _
    $region7: #{tpu_custom_call.1} parent=1 // pred_check_branch
      %28 = sbr.rel (0) target = $region9
    $region8: #{tpu_custom_call.1} parent=1 // pred_region
      %s30 = ssub.s32 512, 512
      %31 = vsyncadd [#allocation8], %s30
      %s32 = sshll.u32 [#allocation7], 4
      %s33 = int_to_ptr.vmem [resolvable:$true] %s32
      %38 = dma.hbm_to_vmem [thread:$0]  %s1, 512, %s33, [#allocation8], 128, 128, 8
    $region9: #{tpu_custom_call.1} parent=1 // pred_fallthru
      _
    // Predicated region
    $region10: #{tpu_custom_call.1} parent=1 // pred_check
      _
    $region11: #{tpu_custom_call.1} parent=1 // pred_check_branch
      %40 = sbr.rel (0) target = $region13
    $region12: #{tpu_custom_call.1} parent=1 // pred_region
      _
    $region13: #{tpu_custom_call.1} parent=1 // pred_fallthru
      _
    // Predicated region
    $region14: #{tpu_custom_call.1} parent=1 // pred_check
      _
    $region15: #{tpu_custom_call.1} parent=1 // pred_check_branch
      %42 = sbr.rel (0) target = $region17
    $region16: #{tpu_custom_call.1} parent=1 // pred_region
      %43 = dma.done [#allocation5], 512
    $region17: #{tpu_custom_call.1} parent=1 // pred_fallthru
      _
    // Predicated region
    $region18: #{tpu_custom_call.1} parent=1 // pred_check
      _
    $region19: #{tpu_custom_call.1} parent=1 // pred_check_branch
      %45 = sbr.rel (0) target = $region21
    $region20: #{tpu_custom_call.1} parent=1 // pred_region
      %46 = dma.done [#allocation8], 512
    $region21: #{tpu_custom_call.1} parent=1 // pred_fallthru
      _
    %p47 = scmp.eq.s32.totalorder 0, 0
    // Predicated region
    $region22: #{tpu_custom_call.1} parent=1 // pred_check
      %p48 = pneg %p47
    $region23: #{tpu_custom_call.1} parent=1 // pred_check_branch
      %50 = sbr.rel (%p48) target = $region25
    $region24: #{tpu_custom_call.1} parent=1 // pred_region
      %vm51 = vcmask 257024
      %52 = vst.msk [vmem:[#allocation2] sm:$0xf] %vm51, 0.0
      %53 = vst.msk [vmem:[#allocation3] sm:$0xf] %vm51, 0.0
    $region25: #{tpu_custom_call.1} parent=1 // pred_fallthru
      _
    %v54 = vld [vmem:[#allocation7] sm:$0xff]
    %v55 = vld [vmem:[#allocation7 + $0x8] sm:$0xff]
    %v56 = vld [vmem:[#allocation7 + $0x10] sm:$0xff]
    %v57 = vld [vmem:[#allocation7 + $0x18] sm:$0xff]
    %v58 = vld [vmem:[%s2] sm:$0x1]
    %v59 = vld [vmem:[#allocation2] sm:$0xf]
    %v60 = vld [vmem:[#allocation3] sm:$0xf]
    %v61 = vld [vmem:[#allocation4] sm:$0xf]
    %v63 = vlaneseq
    %v64 = vshrl.u32 %v63, 7
    %v65 = vsub.s32 0, %v64
    %v66 = vrot.slane %v58, %v65
    %vm68 = vcmask 130048
    %v70 = vsel %vm68, %v61, 0
    %v73 = vsel %vm68, %v54, 0
    %v76 = vsel %vm68, %v55, 0
    %v79 = vsel %vm68, %v56, 0
    %v82 = vsel %vm68, %v57, 0
    %84 = vmatprep.subr.mxu0 0.0
    %85 = vmatpush1.xpose.msra.mxu0 0.0
    %86 = vmatprep.subr.mxu0 0.0
    %87 = vmatpush1.xpose.msra.mxu0 0.0
    %88 = vmatprep.subr.mxu0 0.0
    %89 = vmatpush1.xpose.msra.mxu0 0.0
    %90 = vmatprep.subr.mxu0 0.0
    %91 = vmatpush1.xpose.msra.mxu0 0.0
    %92 = vmatprep.subr.mxu0 0.0
    %93 = vmatpush1.xpose.msra.mxu0 0.0
    %94 = vmatprep.subr.mxu0 0.0
    %95 = vmatpush1.xpose.msra.mxu0 0.0
    %96 = vmatprep.subr.mxu0 0.0
    %97 = vmatpush1.xpose.msra.mxu0 0.0
    %98 = vmatprep.subr.mxu0 0.0
    %99 = vmatpush1.xpose.msra.mxu0 0.0
    %100 = vmatprep.subr.mxu0 0.0
    %101 = vmatpush1.xpose.msra.mxu0 0.0
    %102 = vmatprep.subr.mxu0 0.0
    %103 = vmatpush1.xpose.msra.mxu0 0.0
    %104 = vmatprep.subr.mxu0 0.0
    %105 = vmatpush1.xpose.msra.mxu0 0.0
    %106 = vmatprep.subr.mxu0 0.0
    %107 = vmatpush1.xpose.msra.mxu0 0.0
    %108 = vmatprep.subr.mxu0 0.0
    %109 = vmatpush1.xpose.msra.mxu0 %v82
    %110 = vmatprep.subr.mxu0 0.0
    %111 = vmatpush1.xpose.msra.mxu0 %v79
    %112 = vmatprep.subr.mxu0 0.0
    %113 = vmatpush1.xpose.msra.mxu0 %v76
    %114 = vmatprep.subr.mxu0 0.0
    %115 = vmatpush1.xpose.msra.mxu0 %v73
    %116 = vmatprep.subr.mxu0 0.0
    %117 = vmatpush2.xpose.msra.mxu0 0.0
    %118 = vmatprep.subr.mxu0 0.0
    %119 = vmatpush2.xpose.msra.mxu0 0.0
    %120 = vmatprep.subr.mxu0 0.0
    %121 = vmatpush2.xpose.msra.mxu0 0.0
    %122 = vmatprep.subr.mxu0 0.0
    %123 = vmatpush2.xpose.msra.mxu0 0.0
    %124 = vmatprep.subr.mxu0 0.0
    %125 = vmatpush2.xpose.msra.mxu0 0.0
    %126 = vmatprep.subr.mxu0 0.0
    %127 = vmatpush2.xpose.msra.mxu0 0.0
    %128 = vmatprep.subr.mxu0 0.0
    %129 = vmatpush2.xpose.msra.mxu0 0.0
    %130 = vmatprep.subr.mxu0 0.0
    %131 = vmatpush2.xpose.msra.mxu0 0.0
    %132 = vmatprep.subr.mxu0 0.0
    %133 = vmatpush2.xpose.msra.mxu0 0.0
    %134 = vmatprep.subr.mxu0 0.0
    %135 = vmatpush2.xpose.msra.mxu0 0.0
    %136 = vmatprep.subr.mxu0 0.0
    %137 = vmatpush2.xpose.msra.mxu0 0.0
    %138 = vmatprep.subr.mxu0 0.0
    %139 = vmatpush2.xpose.msra.mxu0 0.0
    %140 = vmatprep.subr.mxu0 0.0
    %141 = vmatpush2.xpose.msra.mxu0 0.0
    %142 = vmatprep.subr.mxu0 0.0
    %143 = vmatpush2.xpose.msra.mxu0 0.0
    %144 = vmatprep.subr.mxu0 0.0
    %145 = vmatpush2.xpose.msra.mxu0 0.0
    %146 = vmatprep.subr.mxu0 0.0
    %147 = vmatpush2.xpose.msra.mxu0 0.0
    %148 = vmatprep.mubr.f32.mxu0 0.0
    %149 = vmatmul.mubr.f32.gmra.mxu0 %v70
    %v150 = vpop.f32.mrf.mxu0
    %v151 = vadd.f32 %v66, %v150
    %v152 = vpop.f32.mrf.mxu0
    %153 = vdwg.mxu0
    %154 = vrot.lane.b32.xlu0 %v54, 112
    %v155 = vpop.permute.xlu0 %154
    %156 = vrot.lane.b32.xlu0 %v55, 112
    %v157 = vpop.permute.xlu0 %156
    %158 = vrot.lane.b32.xlu0 %v56, 112
    %v159 = vpop.permute.xlu0 %158
    %160 = vrot.lane.b32.xlu0 %v57, 112
    %v161 = vpop.permute.xlu0 %160
    %vm162 = vcmask 261120
    %v164 = vsel %vm162, %v59, 0
    %v166 = vsel %vm162, %v155, 0
    %v168 = vsel %vm162, %v157, 0
    %v170 = vsel %vm162, %v159, 0
    %v172 = vsel %vm162, %v161, 0
    %174 = vmatprep.subr.mxu0 0.0
    %175 = vmatpush1.xpose.msra.mxu0 0.0
    %176 = vmatprep.subr.mxu0 0.0
    %177 = vmatpush1.xpose.msra.mxu0 0.0
    %178 = vmatprep.subr.mxu0 0.0
    %179 = vmatpush1.xpose.msra.mxu0 0.0
    %180 = vmatprep.subr.mxu0 0.0
    %181 = vmatpush1.xpose.msra.mxu0 0.0
    %182 = vmatprep.subr.mxu0 0.0
    %183 = vmatpush1.xpose.msra.mxu0 0.0
    %184 = vmatprep.subr.mxu0 0.0
    %185 = vmatpush1.xpose.msra.mxu0 0.0
    %186 = vmatprep.subr.mxu0 0.0
    %187 = vmatpush1.xpose.msra.mxu0 0.0
    %188 = vmatprep.subr.mxu0 0.0
    %189 = vmatpush1.xpose.msra.mxu0 0.0
    %190 = vmatprep.subr.mxu0 0.0
    %191 = vmatpush1.xpose.msra.mxu0 0.0
    %192 = vmatprep.subr.mxu0 0.0
    %193 = vmatpush1.xpose.msra.mxu0 0.0
    %194 = vmatprep.subr.mxu0 0.0
    %195 = vmatpush1.xpose.msra.mxu0 0.0
    %196 = vmatprep.subr.mxu0 0.0
    %197 = vmatpush1.xpose.msra.mxu0 0.0
    %198 = vmatprep.subr.mxu0 0.0
    %199 = vmatpush1.xpose.msra.mxu0 %v172
    %200 = vmatprep.subr.mxu0 0.0
    %201 = vmatpush1.xpose.msra.mxu0 %v170
    %202 = vmatprep.subr.mxu0 0.0
    %203 = vmatpush1.xpose.msra.mxu0 %v168
    %204 = vmatprep.subr.mxu0 0.0
    %205 = vmatpush1.xpose.msra.mxu0 %v166
    %206 = vmatprep.subr.mxu0 0.0
    %207 = vmatpush2.xpose.msra.mxu0 0.0
    %208 = vmatprep.subr.mxu0 0.0
    %209 = vmatpush2.xpose.msra.mxu0 0.0
    %210 = vmatprep.subr.mxu0 0.0
    %211 = vmatpush2.xpose.msra.mxu0 0.0
    %212 = vmatprep.subr.mxu0 0.0
    %213 = vmatpush2.xpose.msra.mxu0 0.0
    %214 = vmatprep.subr.mxu0 0.0
    %215 = vmatpush2.xpose.msra.mxu0 0.0
    %216 = vmatprep.subr.mxu0 0.0
    %217 = vmatpush2.xpose.msra.mxu0 0.0
    %218 = vmatprep.subr.mxu0 0.0
    %219 = vmatpush2.xpose.msra.mxu0 0.0
    %220 = vmatprep.subr.mxu0 0.0
    %221 = vmatpush2.xpose.msra.mxu0 0.0
    %222 = vmatprep.subr.mxu0 0.0
    %223 = vmatpush2.xpose.msra.mxu0 0.0
    %224 = vmatprep.subr.mxu0 0.0
    %225 = vmatpush2.xpose.msra.mxu0 0.0
    %226 = vmatprep.subr.mxu0 0.0
    %227 = vmatpush2.xpose.msra.mxu0 0.0
    %228 = vmatprep.subr.mxu0 0.0
    %229 = vmatpush2.xpose.msra.mxu0 0.0
    %230 = vmatprep.subr.mxu0 0.0
    %231 = vmatpush2.xpose.msra.mxu0 0.0
    %232 = vmatprep.subr.mxu0 0.0
    %233 = vmatpush2.xpose.msra.mxu0 0.0
    %234 = vmatprep.subr.mxu0 0.0
    %235 = vmatpush2.xpose.msra.mxu0 0.0
    %236 = vmatprep.subr.mxu0 0.0
    %237 = vmatpush2.xpose.msra.mxu0 0.0
    %238 = vmatprep.mubr.f32.mxu0 0.0
    %239 = vmatmul.mubr.f32.gmra.mxu0 %v164
    %v240 = vpop.f32.mrf.mxu0
    %v241 = vadd.f32 0.0, %v240
    %v242 = vpop.f32.mrf.mxu0
    %243 = vdwg.mxu0
    %v244 = vadd.f32 %v151, %v241
    %v245 = vxor.u32 %v244, 2147483648
    %v246 = vmul.f32 %v245, 1.442695
    %v247 = vpow.pop %v246
    %v248 = vadd.f32 %v247, 1.0
    %v249 = vrcp.pop %v248
    %v250 = vmul.f32 1.0, %v249
    %v251 = vtanh.pop %v244
    %v252 = vadd.f32 %v60, %v251
    %v253 = vmul.f32 %v252, %v250
    %v254 = vtanh.pop %v253
    %v255 = vmul.f32 %v254, %v250
    %v257 = vrot.slane %v255, 1
    %258 = vrot.lane.b32.xlu0 %v257, 32
    %v259 = vpop.permute.xlu0 %258
    %v261 = vrot.slane %v255, 2
    %262 = vrot.lane.b32.xlu0 %v261, 64
    %v263 = vpop.permute.xlu0 %262
    %v265 = vrot.slane %v255, 3
    %266 = vrot.lane.b32.xlu0 %v265, 96
    %v267 = vpop.permute.xlu0 %266
    %v269 = vsel %vm162, %v255, %v259
    %vm270 = vcmask 523264
    %v271 = vsel %vm270, %v269, %v263
    %vm272 = vcmask 785408
    %v273 = vsel %vm272, %v271, %v267
    %274 = vst [vmem:[#allocation9] sm:$0x1] %v273
    %s275 = scalar_lea.vmem [#allocation4], 4
    %v276 = vld [vmem:[%s275] sm:$0xf]
    %v278 = vsel %vm68, %v276, 0
    %280 = vmatprep.subr.mxu0 0.0
    %281 = vmatpush1.xpose.msra.mxu0 0.0
    %282 = vmatprep.subr.mxu0 0.0
    %283 = vmatpush1.xpose.msra.mxu0 0.0
    %284 = vmatprep.subr.mxu0 0.0
    %285 = vmatpush1.xpose.msra.mxu0 0.0
    %286 = vmatprep.subr.mxu0 0.0
    %287 = vmatpush1.xpose.msra.mxu0 0.0
    %288 = vmatprep.subr.mxu0 0.0
    %289 = vmatpush1.xpose.msra.mxu0 0.0
    %290 = vmatprep.subr.mxu0 0.0
    %291 = vmatpush1.xpose.msra.mxu0 0.0
    %292 = vmatprep.subr.mxu0 0.0
    %293 = vmatpush1.xpose.msra.mxu0 0.0
    %294 = vmatprep.subr.mxu0 0.0
    %295 = vmatpush1.xpose.msra.mxu0 0.0
    %296 = vmatprep.subr.mxu0 0.0
    %297 = vmatpush1.xpose.msra.mxu0 0.0
    %298 = vmatprep.subr.mxu0 0.0
    %299 = vmatpush1.xpose.msra.mxu0 0.0
    %300 = vmatprep.subr.mxu0 0.0
    %301 = vmatpush1.xpose.msra.mxu0 0.0
    %302 = vmatprep.subr.mxu0 0.0
    %303 = vmatpush1.xpose.msra.mxu0 0.0
    %304 = vmatprep.subr.mxu0 0.0
    %305 = vmatpush1.xpose.msra.mxu0 %v82
    %306 = vmatprep.subr.mxu0 0.0
    %307 = vmatpush1.xpose.msra.mxu0 %v79
    %308 = vmatprep.subr.mxu0 0.0
    %309 = vmatpush1.xpose.msra.mxu0 %v76
    %310 = vmatprep.subr.mxu0 0.0
    %311 = vmatpush1.xpose.msra.mxu0 %v73
    %312 = vmatprep.subr.mxu0 0.0
    %313 = vmatpush2.xpose.msra.mxu0 0.0
    %314 = vmatprep.subr.mxu0 0.0
    %315 = vmatpush2.xpose.msra.mxu0 0.0
    %316 = vmatprep.subr.mxu0 0.0
    %317 = vmatpush2.xpose.msra.mxu0 0.0
    %318 = vmatprep.subr.mxu0 0.0
    %319 = vmatpush2.xpose.msra.mxu0 0.0
    %320 = vmatprep.subr.mxu0 0.0
    %321 = vmatpush2.xpose.msra.mxu0 0.0
    %322 = vmatprep.subr.mxu0 0.0
    %323 = vmatpush2.xpose.msra.mxu0 0.0
    %324 = vmatprep.subr.mxu0 0.0
    %325 = vmatpush2.xpose.msra.mxu0 0.0
    %326 = vmatprep.subr.mxu0 0.0
    %327 = vmatpush2.xpose.msra.mxu0 0.0
    %328 = vmatprep.subr.mxu0 0.0
    %329 = vmatpush2.xpose.msra.mxu0 0.0
    %330 = vmatprep.subr.mxu0 0.0
    %331 = vmatpush2.xpose.msra.mxu0 0.0
    %332 = vmatprep.subr.mxu0 0.0
    %333 = vmatpush2.xpose.msra.mxu0 0.0
    %334 = vmatprep.subr.mxu0 0.0
    %335 = vmatpush2.xpose.msra.mxu0 0.0
    %336 = vmatprep.subr.mxu0 0.0
    %337 = vmatpush2.xpose.msra.mxu0 0.0
    %338 = vmatprep.subr.mxu0 0.0
    %339 = vmatpush2.xpose.msra.mxu0 0.0
    %340 = vmatprep.subr.mxu0 0.0
    %341 = vmatpush2.xpose.msra.mxu0 0.0
    %342 = vmatprep.subr.mxu0 0.0
    %343 = vmatpush2.xpose.msra.mxu0 0.0
    %344 = vmatprep.mubr.f32.mxu0 0.0
    %345 = vmatmul.mubr.f32.gmra.mxu0 %v278
    %v346 = vpop.f32.mrf.mxu0
    %v347 = vadd.f32 %v66, %v346
    %v348 = vpop.f32.mrf.mxu0
    %349 = vdwg.mxu0
    %v350 = vsel %vm162, %v255, 0
    %352 = vmatprep.subr.mxu0 0.0
    %353 = vmatpush1.xpose.msra.mxu0 0.0
    %354 = vmatprep.subr.mxu0 0.0
    %355 = vmatpush1.xpose.msra.mxu0 0.0
    %356 = vmatprep.subr.mxu0 0.0
    %357 = vmatpush1.xpose.msra.mxu0 0.0
    %358 = vmatprep.subr.mxu0 0.0
    %359 = vmatpush1.xpose.msra.mxu0 0.0
    %360 = vmatprep.subr.mxu0 0.0
    %361 = vmatpush1.xpose.msra.mxu0 0.0
    %362 = vmatprep.subr.mxu0 0.0
    %363 = vmatpush1.xpose.msra.mxu0 0.0
    %364 = vmatprep.subr.mxu0 0.0
    %365 = vmatpush1.xpose.msra.mxu0 0.0
    %366 = vmatprep.subr.mxu0 0.0
    %367 = vmatpush1.xpose.msra.mxu0 0.0
    %368 = vmatprep.subr.mxu0 0.0
    %369 = vmatpush1.xpose.msra.mxu0 0.0
    %370 = vmatprep.subr.mxu0 0.0
    %371 = vmatpush1.xpose.msra.mxu0 0.0
    %372 = vmatprep.subr.mxu0 0.0
    %373 = vmatpush1.xpose.msra.mxu0 0.0
    %374 = vmatprep.subr.mxu0 0.0
    %375 = vmatpush1.xpose.msra.mxu0 0.0
    %376 = vmatprep.subr.mxu0 0.0
    %377 = vmatpush1.xpose.msra.mxu0 %v172
    %378 = vmatprep.subr.mxu0 0.0
    %379 = vmatpush1.xpose.msra.mxu0 %v170
    %380 = vmatprep.subr.mxu0 0.0
    %381 = vmatpush1.xpose.msra.mxu0 %v168
    %382 = vmatprep.subr.mxu0 0.0
    %383 = vmatpush1.xpose.msra.mxu0 %v166
    %384 = vmatprep.subr.mxu0 0.0
    %385 = vmatpush2.xpose.msra.mxu0 0.0
    %386 = vmatprep.subr.mxu0 0.0
    %387 = vmatpush2.xpose.msra.mxu0 0.0
    %388 = vmatprep.subr.mxu0 0.0
    %389 = vmatpush2.xpose.msra.mxu0 0.0
    %390 = vmatprep.subr.mxu0 0.0
    %391 = vmatpush2.xpose.msra.mxu0 0.0
    %392 = vmatprep.subr.mxu0 0.0
    %393 = vmatpush2.xpose.msra.mxu0 0.0
    %394 = vmatprep.subr.mxu0 0.0
    %395 = vmatpush2.xpose.msra.mxu0 0.0
    %396 = vmatprep.subr.mxu0 0.0
    %397 = vmatpush2.xpose.msra.mxu0 0.0
    %398 = vmatprep.subr.mxu0 0.0
    %399 = vmatpush2.xpose.msra.mxu0 0.0
    %400 = vmatprep.subr.mxu0 0.0
    %401 = vmatpush2.xpose.msra.mxu0 0.0
    %402 = vmatprep.subr.mxu0 0.0
    %403 = vmatpush2.xpose.msra.mxu0 0.0
    %404 = vmatprep.subr.mxu0 0.0
    %405 = vmatpush2.xpose.msra.mxu0 0.0
    %406 = vmatprep.subr.mxu0 0.0
    %407 = vmatpush2.xpose.msra.mxu0 0.0
    %408 = vmatprep.subr.mxu0 0.0
    %409 = vmatpush2.xpose.msra.mxu0 0.0
    %410 = vmatprep.subr.mxu0 0.0
    %411 = vmatpush2.xpose.msra.mxu0 0.0
    %412 = vmatprep.subr.mxu0 0.0
    %413 = vmatpush2.xpose.msra.mxu0 0.0
    %414 = vmatprep.subr.mxu0 0.0
    %415 = vmatpush2.xpose.msra.mxu0 0.0
    %416 = vmatprep.mubr.f32.mxu0 0.0
    %417 = vmatmul.mubr.f32.gmra.mxu0 %v350
    %v418 = vpop.f32.mrf.mxu0
    %v419 = vadd.f32 0.0, %v418
    %v420 = vpop.f32.mrf.mxu0
    %421 = vdwg.mxu0
    %v422 = vadd.f32 %v347, %v419
    %v423 = vxor.u32 %v422, 2147483648
    %v424 = vmul.f32 %v423, 1.442695
    %v425 = vpow.pop %v424
    %v426 = vadd.f32 %v425, 1.0
    %v427 = vrcp.pop %v426
    %v428 = vmul.f32 1.0, %v427
    %v429 = vtanh.pop %v422
    %v430 = vadd.f32 %v253, %v429
    %v431 = vmul.f32 %v430, %v428
    %v432 = vtanh.pop %v431
    %v433 = vmul.f32 %v432, %v428
    %v435 = vrot.slane %v433, 1
    %436 = vrot.lane.b32.xlu0 %v435, 32
    %v437 = vpop.permute.xlu0 %436
    %v439 = vrot.slane %v433, 2
    %440 = vrot.lane.b32.xlu0 %v439, 64
    %v441 = vpop.permute.xlu0 %440
    %v443 = vrot.slane %v433, 3
    %444 = vrot.lane.b32.xlu0 %v443, 96
    %v445 = vpop.permute.xlu0 %444
    %v447 = vsel %vm162, %v433, %v437
    %v448 = vsel %vm270, %v447, %v441
    %v449 = vsel %vm272, %v448, %v445
    %450 = vst [vmem:[#allocation9 + $0x1] sm:$0x1] %v449
    %s451 = scalar_lea.vmem [#allocation4], 8
    %v452 = vld [vmem:[%s451] sm:$0xf]
    %v454 = vsel %vm68, %v452, 0
    %456 = vmatprep.subr.mxu0 0.0
    %457 = vmatpush1.xpose.msra.mxu0 0.0
    %458 = vmatprep.subr.mxu0 0.0
    %459 = vmatpush1.xpose.msra.mxu0 0.0
    %460 = vmatprep.subr.mxu0 0.0
    %461 = vmatpush1.xpose.msra.mxu0 0.0
    %462 = vmatprep.subr.mxu0 0.0
    %463 = vmatpush1.xpose.msra.mxu0 0.0
    %464 = vmatprep.subr.mxu0 0.0
    %465 = vmatpush1.xpose.msra.mxu0 0.0
    %466 = vmatprep.subr.mxu0 0.0
    %467 = vmatpush1.xpose.msra.mxu0 0.0
    %468 = vmatprep.subr.mxu0 0.0
    %469 = vmatpush1.xpose.msra.mxu0 0.0
    %470 = vmatprep.subr.mxu0 0.0
    %471 = vmatpush1.xpose.msra.mxu0 0.0
    %472 = vmatprep.subr.mxu0 0.0
    %473 = vmatpush1.xpose.msra.mxu0 0.0
    %474 = vmatprep.subr.mxu0 0.0
    %475 = vmatpush1.xpose.msra.mxu0 0.0
    %476 = vmatprep.subr.mxu0 0.0
    %477 = vmatpush1.xpose.msra.mxu0 0.0
    %478 = vmatprep.subr.mxu0 0.0
    %479 = vmatpush1.xpose.msra.mxu0 0.0
    %480 = vmatprep.subr.mxu0 0.0
    %481 = vmatpush1.xpose.msra.mxu0 %v82
    %482 = vmatprep.subr.mxu0 0.0
    %483 = vmatpush1.xpose.msra.mxu0 %v79
    %484 = vmatprep.subr.mxu0 0.0
    %485 = vmatpush1.xpose.msra.mxu0 %v76
    %486 = vmatprep.subr.mxu0 0.0
    %487 = vmatpush1.xpose.msra.mxu0 %v73
    %488 = vmatprep.subr.mxu0 0.0
    %489 = vmatpush2.xpose.msra.mxu0 0.0
    %490 = vmatprep.subr.mxu0 0.0
    %491 = vmatpush2.xpose.msra.mxu0 0.0
    %492 = vmatprep.subr.mxu0 0.0
    %493 = vmatpush2.xpose.msra.mxu0 0.0
    %494 = vmatprep.subr.mxu0 0.0
    %495 = vmatpush2.xpose.msra.mxu0 0.0
    %496 = vmatprep.subr.mxu0 0.0
    %497 = vmatpush2.xpose.msra.mxu0 0.0
    %498 = vmatprep.subr.mxu0 0.0
    %499 = vmatpush2.xpose.msra.mxu0 0.0
    %500 = vmatprep.subr.mxu0 0.0
    %501 = vmatpush2.xpose.msra.mxu0 0.0
    %502 = vmatprep.subr.mxu0 0.0
    %503 = vmatpush2.xpose.msra.mxu0 0.0
    %504 = vmatprep.subr.mxu0 0.0
    %505 = vmatpush2.xpose.msra.mxu0 0.0
    %506 = vmatprep.subr.mxu0 0.0
    %507 = vmatpush2.xpose.msra.mxu0 0.0
    %508 = vmatprep.subr.mxu0 0.0
    %509 = vmatpush2.xpose.msra.mxu0 0.0
    %510 = vmatprep.subr.mxu0 0.0
    %511 = vmatpush2.xpose.msra.mxu0 0.0
    %512 = vmatprep.subr.mxu0 0.0
    %513 = vmatpush2.xpose.msra.mxu0 0.0
    %514 = vmatprep.subr.mxu0 0.0
    %515 = vmatpush2.xpose.msra.mxu0 0.0
    %516 = vmatprep.subr.mxu0 0.0
    %517 = vmatpush2.xpose.msra.mxu0 0.0
    %518 = vmatprep.subr.mxu0 0.0
    %519 = vmatpush2.xpose.msra.mxu0 0.0
    %520 = vmatprep.mubr.f32.mxu0 0.0
    %521 = vmatmul.mubr.f32.gmra.mxu0 %v454
    %v522 = vpop.f32.mrf.mxu0
    %v523 = vadd.f32 %v66, %v522
    %v524 = vpop.f32.mrf.mxu0
    %525 = vdwg.mxu0
    %v526 = vsel %vm162, %v433, 0
    %528 = vmatprep.subr.mxu0 0.0
    %529 = vmatpush1.xpose.msra.mxu0 0.0
    %530 = vmatprep.subr.mxu0 0.0
    %531 = vmatpush1.xpose.msra.mxu0 0.0
    %532 = vmatprep.subr.mxu0 0.0
    %533 = vmatpush1.xpose.msra.mxu0 0.0
    %534 = vmatprep.subr.mxu0 0.0
    %535 = vmatpush1.xpose.msra.mxu0 0.0
    %536 = vmatprep.subr.mxu0 0.0
    %537 = vmatpush1.xpose.msra.mxu0 0.0
    %538 = vmatprep.subr.mxu0 0.0
    %539 = vmatpush1.xpose.msra.mxu0 0.0
    %540 = vmatprep.subr.mxu0 0.0
    %541 = vmatpush1.xpose.msra.mxu0 0.0
    %542 = vmatprep.subr.mxu0 0.0
    %543 = vmatpush1.xpose.msra.mxu0 0.0
    %544 = vmatprep.subr.mxu0 0.0
    %545 = vmatpush1.xpose.msra.mxu0 0.0
    %546 = vmatprep.subr.mxu0 0.0
    %547 = vmatpush1.xpose.msra.mxu0 0.0
    %548 = vmatprep.subr.mxu0 0.0
    %549 = vmatpush1.xpose.msra.mxu0 0.0
    %550 = vmatprep.subr.mxu0 0.0
    %551 = vmatpush1.xpose.msra.mxu0 0.0
    %552 = vmatprep.subr.mxu0 0.0
    %553 = vmatpush1.xpose.msra.mxu0 %v172
    %554 = vmatprep.subr.mxu0 0.0
    %555 = vmatpush1.xpose.msra.mxu0 %v170
    %556 = vmatprep.subr.mxu0 0.0
    %557 = vmatpush1.xpose.msra.mxu0 %v168
    %558 = vmatprep.subr.mxu0 0.0
    %559 = vmatpush1.xpose.msra.mxu0 %v166
    %560 = vmatprep.subr.mxu0 0.0
    %561 = vmatpush2.xpose.msra.mxu0 0.0
    %562 = vmatprep.subr.mxu0 0.0
    %563 = vmatpush2.xpose.msra.mxu0 0.0
    %564 = vmatprep.subr.mxu0 0.0
    %565 = vmatpush2.xpose.msra.mxu0 0.0
    %566 = vmatprep.subr.mxu0 0.0
    %567 = vmatpush2.xpose.msra.mxu0 0.0
    %568 = vmatprep.subr.mxu0 0.0
    %569 = vmatpush2.xpose.msra.mxu0 0.0
    %570 = vmatprep.subr.mxu0 0.0
    %571 = vmatpush2.xpose.msra.mxu0 0.0
    %572 = vmatprep.subr.mxu0 0.0
    %573 = vmatpush2.xpose.msra.mxu0 0.0
    %574 = vmatprep.subr.mxu0 0.0
    %575 = vmatpush2.xpose.msra.mxu0 0.0
    %576 = vmatprep.subr.mxu0 0.0
    %577 = vmatpush2.xpose.msra.mxu0 0.0
    %578 = vmatprep.subr.mxu0 0.0
    %579 = vmatpush2.xpose.msra.mxu0 0.0
    %580 = vmatprep.subr.mxu0 0.0
    %581 = vmatpush2.xpose.msra.mxu0 0.0
    %582 = vmatprep.subr.mxu0 0.0
    %583 = vmatpush2.xpose.msra.mxu0 0.0
    %584 = vmatprep.subr.mxu0 0.0
    %585 = vmatpush2.xpose.msra.mxu0 0.0
    %586 = vmatprep.subr.mxu0 0.0
    %587 = vmatpush2.xpose.msra.mxu0 0.0
    %588 = vmatprep.subr.mxu0 0.0
    %589 = vmatpush2.xpose.msra.mxu0 0.0
    %590 = vmatprep.subr.mxu0 0.0
    %591 = vmatpush2.xpose.msra.mxu0 0.0
    %592 = vmatprep.mubr.f32.mxu0 0.0
    %593 = vmatmul.mubr.f32.gmra.mxu0 %v526
    %v594 = vpop.f32.mrf.mxu0
    %v595 = vadd.f32 0.0, %v594
    %v596 = vpop.f32.mrf.mxu0
    %597 = vdwg.mxu0
    %v598 = vadd.f32 %v523, %v595
    %v599 = vxor.u32 %v598, 2147483648
    %v600 = vmul.f32 %v599, 1.442695
    %v601 = vpow.pop %v600
    %v602 = vadd.f32 %v601, 1.0
    %v603 = vrcp.pop %v602
    %v604 = vmul.f32 1.0, %v603
    %v605 = vtanh.pop %v598
    %v606 = vadd.f32 %v431, %v605
    %v607 = vmul.f32 %v606, %v604
    %v608 = vtanh.pop %v607
    %v609 = vmul.f32 %v608, %v604
    %v611 = vrot.slane %v609, 1
    %612 = vrot.lane.b32.xlu0 %v611, 32
    %v613 = vpop.permute.xlu0 %612
    %v615 = vrot.slane %v609, 2
    %616 = vrot.lane.b32.xlu0 %v615, 64
    %v617 = vpop.permute.xlu0 %616
    %v619 = vrot.slane %v609, 3
    %620 = vrot.lane.b32.xlu0 %v619, 96
    %v621 = vpop.permute.xlu0 %620
    %v623 = vsel %vm162, %v609, %v613
    %v624 = vsel %vm270, %v623, %v617
    %v625 = vsel %vm272, %v624, %v621
    %626 = vst [vmem:[#allocation9 + $0x2] sm:$0x1] %v625
    %s627 = scalar_lea.vmem [#allocation4], 12
    %v628 = vld [vmem:[%s627] sm:$0xf]
    %v630 = vsel %vm68, %v628, 0
    %632 = vmatprep.subr.mxu0 0.0
    %633 = vmatpush1.xpose.msra.mxu0 0.0
    %634 = vmatprep.subr.mxu0 0.0
    %635 = vmatpush1.xpose.msra.mxu0 0.0
    %636 = vmatprep.subr.mxu0 0.0
    %637 = vmatpush1.xpose.msra.mxu0 0.0
    %638 = vmatprep.subr.mxu0 0.0
    %639 = vmatpush1.xpose.msra.mxu0 0.0
    %640 = vmatprep.subr.mxu0 0.0
    %641 = vmatpush1.xpose.msra.mxu0 0.0
    %642 = vmatprep.subr.mxu0 0.0
    %643 = vmatpush1.xpose.msra.mxu0 0.0
    %644 = vmatprep.subr.mxu0 0.0
    %645 = vmatpush1.xpose.msra.mxu0 0.0
    %646 = vmatprep.subr.mxu0 0.0
    %647 = vmatpush1.xpose.msra.mxu0 0.0
    %648 = vmatprep.subr.mxu0 0.0
    %649 = vmatpush1.xpose.msra.mxu0 0.0
    %650 = vmatprep.subr.mxu0 0.0
    %651 = vmatpush1.xpose.msra.mxu0 0.0
    %652 = vmatprep.subr.mxu0 0.0
    %653 = vmatpush1.xpose.msra.mxu0 0.0
    %654 = vmatprep.subr.mxu0 0.0
    %655 = vmatpush1.xpose.msra.mxu0 0.0
    %656 = vmatprep.subr.mxu0 0.0
    %657 = vmatpush1.xpose.msra.mxu0 %v82
    %658 = vmatprep.subr.mxu0 0.0
    %659 = vmatpush1.xpose.msra.mxu0 %v79
    %660 = vmatprep.subr.mxu0 0.0
    %661 = vmatpush1.xpose.msra.mxu0 %v76
    %662 = vmatprep.subr.mxu0 0.0
    %663 = vmatpush1.xpose.msra.mxu0 %v73
    %664 = vmatprep.subr.mxu0 0.0
    %665 = vmatpush2.xpose.msra.mxu0 0.0
    %666 = vmatprep.subr.mxu0 0.0
    %667 = vmatpush2.xpose.msra.mxu0 0.0
    %668 = vmatprep.subr.mxu0 0.0
    %669 = vmatpush2.xpose.msra.mxu0 0.0
    %670 = vmatprep.subr.mxu0 0.0
    %671 = vmatpush2.xpose.msra.mxu0 0.0
    %672 = vmatprep.subr.mxu0 0.0
    %673 = vmatpush2.xpose.msra.mxu0 0.0
    %674 = vmatprep.subr.mxu0 0.0
    %675 = vmatpush2.xpose.msra.mxu0 0.0
    %676 = vmatprep.subr.mxu0 0.0
    %677 = vmatpush2.xpose.msra.mxu0 0.0
    %678 = vmatprep.subr.mxu0 0.0
    %679 = vmatpush2.xpose.msra.mxu0 0.0
    %680 = vmatprep.subr.mxu0 0.0
    %681 = vmatpush2.xpose.msra.mxu0 0.0
    %682 = vmatprep.subr.mxu0 0.0
    %683 = vmatpush2.xpose.msra.mxu0 0.0
    %684 = vmatprep.subr.mxu0 0.0
    %685 = vmatpush2.xpose.msra.mxu0 0.0
    %686 = vmatprep.subr.mxu0 0.0
    %687 = vmatpush2.xpose.msra.mxu0 0.0
    %688 = vmatprep.subr.mxu0 0.0
    %689 = vmatpush2.xpose.msra.mxu0 0.0
    %690 = vmatprep.subr.mxu0 0.0
    %691 = vmatpush2.xpose.msra.mxu0 0.0
    %692 = vmatprep.subr.mxu0 0.0
    %693 = vmatpush2.xpose.msra.mxu0 0.0
    %694 = vmatprep.subr.mxu0 0.0
    %695 = vmatpush2.xpose.msra.mxu0 0.0
    %696 = vmatprep.mubr.f32.mxu0 0.0
    %697 = vmatmul.mubr.f32.gmra.mxu0 %v630
    %v698 = vpop.f32.mrf.mxu0
    %v699 = vadd.f32 %v66, %v698
    %v700 = vpop.f32.mrf.mxu0
    %701 = vdwg.mxu0
    %v702 = vsel %vm162, %v609, 0
    %704 = vmatprep.subr.mxu0 0.0
    %705 = vmatpush1.xpose.msra.mxu0 0.0
    %706 = vmatprep.subr.mxu0 0.0
    %707 = vmatpush1.xpose.msra.mxu0 0.0
    %708 = vmatprep.subr.mxu0 0.0
    %709 = vmatpush1.xpose.msra.mxu0 0.0
    %710 = vmatprep.subr.mxu0 0.0
    %711 = vmatpush1.xpose.msra.mxu0 0.0
    %712 = vmatprep.subr.mxu0 0.0
    %713 = vmatpush1.xpose.msra.mxu0 0.0
    %714 = vmatprep.subr.mxu0 0.0
    %715 = vmatpush1.xpose.msra.mxu0 0.0
    %716 = vmatprep.subr.mxu0 0.0
    %717 = vmatpush1.xpose.msra.mxu0 0.0
    %718 = vmatprep.subr.mxu0 0.0
    %719 = vmatpush1.xpose.msra.mxu0 0.0
    %720 = vmatprep.subr.mxu0 0.0
    %721 = vmatpush1.xpose.msra.mxu0 0.0
    %722 = vmatprep.subr.mxu0 0.0
    %723 = vmatpush1.xpose.msra.mxu0 0.0
    %724 = vmatprep.subr.mxu0 0.0
    %725 = vmatpush1.xpose.msra.mxu0 0.0
    %726 = vmatprep.subr.mxu0 0.0
    %727 = vmatpush1.xpose.msra.mxu0 0.0
    %728 = vmatprep.subr.mxu0 0.0
    %729 = vmatpush1.xpose.msra.mxu0 %v172
    %730 = vmatprep.subr.mxu0 0.0
    %731 = vmatpush1.xpose.msra.mxu0 %v170
    %732 = vmatprep.subr.mxu0 0.0
    %733 = vmatpush1.xpose.msra.mxu0 %v168
    %734 = vmatprep.subr.mxu0 0.0
    %735 = vmatpush1.xpose.msra.mxu0 %v166
    %736 = vmatprep.subr.mxu0 0.0
    %737 = vmatpush2.xpose.msra.mxu0 0.0
    %738 = vmatprep.subr.mxu0 0.0
    %739 = vmatpush2.xpose.msra.mxu0 0.0
    %740 = vmatprep.subr.mxu0 0.0
    %741 = vmatpush2.xpose.msra.mxu0 0.0
    %742 = vmatprep.subr.mxu0 0.0
    %743 = vmatpush2.xpose.msra.mxu0 0.0
    %744 = vmatprep.subr.mxu0 0.0
    %745 = vmatpush2.xpose.msra.mxu0 0.0
    %746 = vmatprep.subr.mxu0 0.0
    %747 = vmatpush2.xpose.msra.mxu0 0.0
    %748 = vmatprep.subr.mxu0 0.0
    %749 = vmatpush2.xpose.msra.mxu0 0.0
    %750 = vmatprep.subr.mxu0 0.0
    %751 = vmatpush2.xpose.msra.mxu0 0.0
    %752 = vmatprep.subr.mxu0 0.0
    %753 = vmatpush2.xpose.msra.mxu0 0.0
    %754 = vmatprep.subr.mxu0 0.0
    %755 = vmatpush2.xpose.msra.mxu0 0.0
    %756 = vmatprep.subr.mxu0 0.0
    %757 = vmatpush2.xpose.msra.mxu0 0.0
    %758 = vmatprep.subr.mxu0 0.0
    %759 = vmatpush2.xpose.msra.mxu0 0.0
    %760 = vmatprep.subr.mxu0 0.0
    %761 = vmatpush2.xpose.msra.mxu0 0.0
    %762 = vmatprep.subr.mxu0 0.0
    %763 = vmatpush2.xpose.msra.mxu0 0.0
    %764 = vmatprep.subr.mxu0 0.0
    %765 = vmatpush2.xpose.msra.mxu0 0.0
    %766 = vmatprep.subr.mxu0 0.0
    %767 = vmatpush2.xpose.msra.mxu0 0.0
    %768 = vmatprep.mubr.f32.mxu0 0.0
    %769 = vmatmul.mubr.f32.gmra.mxu0 %v702
    %v770 = vpop.f32.mrf.mxu0
    %v771 = vadd.f32 0.0, %v770
    %v772 = vpop.f32.mrf.mxu0
    %773 = vdwg.mxu0
    %v774 = vadd.f32 %v699, %v771
    %v775 = vxor.u32 %v774, 2147483648
    %v776 = vmul.f32 %v775, 1.442695
    %v777 = vpow.pop %v776
    %v778 = vadd.f32 %v777, 1.0
    %v779 = vrcp.pop %v778
    %v780 = vmul.f32 1.0, %v779
    %v781 = vtanh.pop %v774
    %v782 = vadd.f32 %v607, %v781
    %v783 = vmul.f32 %v782, %v780
    %v784 = vtanh.pop %v783
    %v785 = vmul.f32 %v784, %v780
    %v787 = vrot.slane %v785, 1
    %788 = vrot.lane.b32.xlu0 %v787, 32
    %v789 = vpop.permute.xlu0 %788
    %v791 = vrot.slane %v785, 2
    %792 = vrot.lane.b32.xlu0 %v791, 64
    %v793 = vpop.permute.xlu0 %792
    %v795 = vrot.slane %v785, 3
    %796 = vrot.lane.b32.xlu0 %v795, 96
    %v797 = vpop.permute.xlu0 %796
    %v799 = vsel %vm162, %v785, %v789
    %v800 = vsel %vm270, %v799, %v793
    %v801 = vsel %vm272, %v800, %v797
    %802 = vst [vmem:[#allocation9 + $0x3] sm:$0x1] %v801
    %s803 = scalar_lea.vmem [#allocation4], 16
    %v804 = vld [vmem:[%s803] sm:$0xf]
    %v806 = vsel %vm68, %v804, 0
    %808 = vmatprep.subr.mxu0 0.0
    %809 = vmatpush1.xpose.msra.mxu0 0.0
    %810 = vmatprep.subr.mxu0 0.0
    %811 = vmatpush1.xpose.msra.mxu0 0.0
    %812 = vmatprep.subr.mxu0 0.0
    %813 = vmatpush1.xpose.msra.mxu0 0.0
    %814 = vmatprep.subr.mxu0 0.0
    %815 = vmatpush1.xpose.msra.mxu0 0.0
    %816 = vmatprep.subr.mxu0 0.0
    %817 = vmatpush1.xpose.msra.mxu0 0.0
    %818 = vmatprep.subr.mxu0 0.0
    %819 = vmatpush1.xpose.msra.mxu0 0.0
    %820 = vmatprep.subr.mxu0 0.0
    %821 = vmatpush1.xpose.msra.mxu0 0.0
    %822 = vmatprep.subr.mxu0 0.0
    %823 = vmatpush1.xpose.msra.mxu0 0.0
    %824 = vmatprep.subr.mxu0 0.0
    %825 = vmatpush1.xpose.msra.mxu0 0.0
    %826 = vmatprep.subr.mxu0 0.0
    %827 = vmatpush1.xpose.msra.mxu0 0.0
    %828 = vmatprep.subr.mxu0 0.0
    %829 = vmatpush1.xpose.msra.mxu0 0.0
    %830 = vmatprep.subr.mxu0 0.0
    %831 = vmatpush1.xpose.msra.mxu0 0.0
    %832 = vmatprep.subr.mxu0 0.0
    %833 = vmatpush1.xpose.msra.mxu0 %v82
    %834 = vmatprep.subr.mxu0 0.0
    %835 = vmatpush1.xpose.msra.mxu0 %v79
    %836 = vmatprep.subr.mxu0 0.0
    %837 = vmatpush1.xpose.msra.mxu0 %v76
    %838 = vmatprep.subr.mxu0 0.0
    %839 = vmatpush1.xpose.msra.mxu0 %v73
    %840 = vmatprep.subr.mxu0 0.0
    %841 = vmatpush2.xpose.msra.mxu0 0.0
    %842 = vmatprep.subr.mxu0 0.0
    %843 = vmatpush2.xpose.msra.mxu0 0.0
    %844 = vmatprep.subr.mxu0 0.0
    %845 = vmatpush2.xpose.msra.mxu0 0.0
    %846 = vmatprep.subr.mxu0 0.0
    %847 = vmatpush2.xpose.msra.mxu0 0.0
    %848 = vmatprep.subr.mxu0 0.0
    %849 = vmatpush2.xpose.msra.mxu0 0.0
    %850 = vmatprep.subr.mxu0 0.0
    %851 = vmatpush2.xpose.msra.mxu0 0.0
    %852 = vmatprep.subr.mxu0 0.0
    %853 = vmatpush2.xpose.msra.mxu0 0.0
    %854 = vmatprep.subr.mxu0 0.0
    %855 = vmatpush2.xpose.msra.mxu0 0.0
    %856 = vmatprep.subr.mxu0 0.0
    %857 = vmatpush2.xpose.msra.mxu0 0.0
    %858 = vmatprep.subr.mxu0 0.0
    %859 = vmatpush2.xpose.msra.mxu0 0.0
    %860 = vmatprep.subr.mxu0 0.0
    %861 = vmatpush2.xpose.msra.mxu0 0.0
    %862 = vmatprep.subr.mxu0 0.0
    %863 = vmatpush2.xpose.msra.mxu0 0.0
    %864 = vmatprep.subr.mxu0 0.0
    %865 = vmatpush2.xpose.msra.mxu0 0.0
    %866 = vmatprep.subr.mxu0 0.0
    %867 = vmatpush2.xpose.msra.mxu0 0.0
    %868 = vmatprep.subr.mxu0 0.0
    %869 = vmatpush2.xpose.msra.mxu0 0.0
    %870 = vmatprep.subr.mxu0 0.0
    %871 = vmatpush2.xpose.msra.mxu0 0.0
    %872 = vmatprep.mubr.f32.mxu0 0.0
    %873 = vmatmul.mubr.f32.gmra.mxu0 %v806
    %v874 = vpop.f32.mrf.mxu0
    %v875 = vadd.f32 %v66, %v874
    %v876 = vpop.f32.mrf.mxu0
    %877 = vdwg.mxu0
    %v878 = vsel %vm162, %v785, 0
    %880 = vmatprep.subr.mxu0 0.0
    %881 = vmatpush1.xpose.msra.mxu0 0.0
    %882 = vmatprep.subr.mxu0 0.0
    %883 = vmatpush1.xpose.msra.mxu0 0.0
    %884 = vmatprep.subr.mxu0 0.0
    %885 = vmatpush1.xpose.msra.mxu0 0.0
    %886 = vmatprep.subr.mxu0 0.0
    %887 = vmatpush1.xpose.msra.mxu0 0.0
    %888 = vmatprep.subr.mxu0 0.0
    %889 = vmatpush1.xpose.msra.mxu0 0.0
    %890 = vmatprep.subr.mxu0 0.0
    %891 = vmatpush1.xpose.msra.mxu0 0.0
    %892 = vmatprep.subr.mxu0 0.0
    %893 = vmatpush1.xpose.msra.mxu0 0.0
    %894 = vmatprep.subr.mxu0 0.0
    %895 = vmatpush1.xpose.msra.mxu0 0.0
    %896 = vmatprep.subr.mxu0 0.0
    %897 = vmatpush1.xpose.msra.mxu0 0.0
    %898 = vmatprep.subr.mxu0 0.0
    %899 = vmatpush1.xpose.msra.mxu0 0.0
    %900 = vmatprep.subr.mxu0 0.0
    %901 = vmatpush1.xpose.msra.mxu0 0.0
    %902 = vmatprep.subr.mxu0 0.0
    %903 = vmatpush1.xpose.msra.mxu0 0.0
    %904 = vmatprep.subr.mxu0 0.0
    %905 = vmatpush1.xpose.msra.mxu0 %v172
    %906 = vmatprep.subr.mxu0 0.0
    %907 = vmatpush1.xpose.msra.mxu0 %v170
    %908 = vmatprep.subr.mxu0 0.0
    %909 = vmatpush1.xpose.msra.mxu0 %v168
    %910 = vmatprep.subr.mxu0 0.0
    %911 = vmatpush1.xpose.msra.mxu0 %v166
    %912 = vmatprep.subr.mxu0 0.0
    %913 = vmatpush2.xpose.msra.mxu0 0.0
    %914 = vmatprep.subr.mxu0 0.0
    %915 = vmatpush2.xpose.msra.mxu0 0.0
    %916 = vmatprep.subr.mxu0 0.0
    %917 = vmatpush2.xpose.msra.mxu0 0.0
    %918 = vmatprep.subr.mxu0 0.0
    %919 = vmatpush2.xpose.msra.mxu0 0.0
    %920 = vmatprep.subr.mxu0 0.0
    %921 = vmatpush2.xpose.msra.mxu0 0.0
    %922 = vmatprep.subr.mxu0 0.0
    %923 = vmatpush2.xpose.msra.mxu0 0.0
    %924 = vmatprep.subr.mxu0 0.0
    %925 = vmatpush2.xpose.msra.mxu0 0.0
    %926 = vmatprep.subr.mxu0 0.0
    %927 = vmatpush2.xpose.msra.mxu0 0.0
    %928 = vmatprep.subr.mxu0 0.0
    %929 = vmatpush2.xpose.msra.mxu0 0.0
    %930 = vmatprep.subr.mxu0 0.0
    %931 = vmatpush2.xpose.msra.mxu0 0.0
    %932 = vmatprep.subr.mxu0 0.0
    %933 = vmatpush2.xpose.msra.mxu0 0.0
    %934 = vmatprep.subr.mxu0 0.0
    %935 = vmatpush2.xpose.msra.mxu0 0.0
    %936 = vmatprep.subr.mxu0 0.0
    %937 = vmatpush2.xpose.msra.mxu0 0.0
    %938 = vmatprep.subr.mxu0 0.0
    %939 = vmatpush2.xpose.msra.mxu0 0.0
    %940 = vmatprep.subr.mxu0 0.0
    %941 = vmatpush2.xpose.msra.mxu0 0.0
    %942 = vmatprep.subr.mxu0 0.0
    %943 = vmatpush2.xpose.msra.mxu0 0.0
    %944 = vmatprep.mubr.f32.mxu0 0.0
    %945 = vmatmul.mubr.f32.gmra.mxu0 %v878
    %v946 = vpop.f32.mrf.mxu0
    %v947 = vadd.f32 0.0, %v946
    %v948 = vpop.f32.mrf.mxu0
    %949 = vdwg.mxu0
    %v950 = vadd.f32 %v875, %v947
    %v951 = vxor.u32 %v950, 2147483648
    %v952 = vmul.f32 %v951, 1.442695
    %v953 = vpow.pop %v952
    %v954 = vadd.f32 %v953, 1.0
    %v955 = vrcp.pop %v954
    %v956 = vmul.f32 1.0, %v955
    %v957 = vtanh.pop %v950
    %v958 = vadd.f32 %v783, %v957
    %v959 = vmul.f32 %v958, %v956
    %v960 = vtanh.pop %v959
    %v961 = vmul.f32 %v960, %v956
    %v963 = vrot.slane %v961, 1
    %964 = vrot.lane.b32.xlu0 %v963, 32
    %v965 = vpop.permute.xlu0 %964
    %v967 = vrot.slane %v961, 2
    %968 = vrot.lane.b32.xlu0 %v967, 64
    %v969 = vpop.permute.xlu0 %968
    %v971 = vrot.slane %v961, 3
    %972 = vrot.lane.b32.xlu0 %v971, 96
    %v973 = vpop.permute.xlu0 %972
    %v975 = vsel %vm162, %v961, %v965
    %v976 = vsel %vm270, %v975, %v969
    %v977 = vsel %vm272, %v976, %v973
    %978 = vst [vmem:[#allocation9 + $0x4] sm:$0x1] %v977
    %s979 = scalar_lea.vmem [#allocation4], 20
    %v980 = vld [vmem:[%s979] sm:$0xf]
    %v982 = vsel %vm68, %v980, 0
    %984 = vmatprep.subr.mxu0 0.0
    %985 = vmatpush1.xpose.msra.mxu0 0.0
    %986 = vmatprep.subr.mxu0 0.0
    %987 = vmatpush1.xpose.msra.mxu0 0.0
    %988 = vmatprep.subr.mxu0 0.0
    %989 = vmatpush1.xpose.msra.mxu0 0.0
    %990 = vmatprep.subr.mxu0 0.0
    %991 = vmatpush1.xpose.msra.mxu0 0.0
    %992 = vmatprep.subr.mxu0 0.0
    %993 = vmatpush1.xpose.msra.mxu0 0.0
    %994 = vmatprep.subr.mxu0 0.0
    %995 = vmatpush1.xpose.msra.mxu0 0.0
    %996 = vmatprep.subr.mxu0 0.0
    %997 = vmatpush1.xpose.msra.mxu0 0.0
    %998 = vmatprep.subr.mxu0 0.0
    %999 = vmatpush1.xpose.msra.mxu0 0.0
    %1000 = vmatprep.subr.mxu0 0.0
    %1001 = vmatpush1.xpose.msra.mxu0 0.0
    %1002 = vmatprep.subr.mxu0 0.0
    %1003 = vmatpush1.xpose.msra.mxu0 0.0
    %1004 = vmatprep.subr.mxu0 0.0
    %1005 = vmatpush1.xpose.msra.mxu0 0.0
    %1006 = vmatprep.subr.mxu0 0.0
    %1007 = vmatpush1.xpose.msra.mxu0 0.0
    %1008 = vmatprep.subr.mxu0 0.0
    %1009 = vmatpush1.xpose.msra.mxu0 %v82
    %1010 = vmatprep.subr.mxu0 0.0
    %1011 = vmatpush1.xpose.msra.mxu0 %v79
    %1012 = vmatprep.subr.mxu0 0.0
    %1013 = vmatpush1.xpose.msra.mxu0 %v76
    %1014 = vmatprep.subr.mxu0 0.0
    %1015 = vmatpush1.xpose.msra.mxu0 %v73
    %1016 = vmatprep.subr.mxu0 0.0
    %1017 = vmatpush2.xpose.msra.mxu0 0.0
    %1018 = vmatprep.subr.mxu0 0.0
    %1019 = vmatpush2.xpose.msra.mxu0 0.0
    %1020 = vmatprep.subr.mxu0 0.0
    %1021 = vmatpush2.xpose.msra.mxu0 0.0
    %1022 = vmatprep.subr.mxu0 0.0
    %1023 = vmatpush2.xpose.msra.mxu0 0.0
    %1024 = vmatprep.subr.mxu0 0.0
    %1025 = vmatpush2.xpose.msra.mxu0 0.0
    %1026 = vmatprep.subr.mxu0 0.0
    %1027 = vmatpush2.xpose.msra.mxu0 0.0
    %1028 = vmatprep.subr.mxu0 0.0
    %1029 = vmatpush2.xpose.msra.mxu0 0.0
    %1030 = vmatprep.subr.mxu0 0.0
    %1031 = vmatpush2.xpose.msra.mxu0 0.0
    %1032 = vmatprep.subr.mxu0 0.0
    %1033 = vmatpush2.xpose.msra.mxu0 0.0
    %1034 = vmatprep.subr.mxu0 0.0
    %1035 = vmatpush2.xpose.msra.mxu0 0.0
    %1036 = vmatprep.subr.mxu0 0.0
    %1037 = vmatpush2.xpose.msra.mxu0 0.0
    %1038 = vmatprep.subr.mxu0 0.0
    %1039 = vmatpush2.xpose.msra.mxu0 0.0
    %1040 = vmatprep.subr.mxu0 0.0
    %1041 = vmatpush2.xpose.msra.mxu0 0.0
    %1042 = vmatprep.subr.mxu0 0.0
    %1043 = vmatpush2.xpose.msra.mxu0 0.0
    %1044 = vmatprep.subr.mxu0 0.0
    %1045 = vmatpush2.xpose.msra.mxu0 0.0
    %1046 = vmatprep.subr.mxu0 0.0
    %1047 = vmatpush2.xpose.msra.mxu0 0.0
    %1048 = vmatprep.mubr.f32.mxu0 0.0
    %1049 = vmatmul.mubr.f32.gmra.mxu0 %v982
    %v1050 = vpop.f32.mrf.mxu0
    %v1051 = vadd.f32 %v66, %v1050
    %v1052 = vpop.f32.mrf.mxu0
    %1053 = vdwg.mxu0
    %v1054 = vsel %vm162, %v961, 0
    %1056 = vmatprep.subr.mxu0 0.0
    %1057 = vmatpush1.xpose.msra.mxu0 0.0
    %1058 = vmatprep.subr.mxu0 0.0
    %1059 = vmatpush1.xpose.msra.mxu0 0.0
    %1060 = vmatprep.subr.mxu0 0.0
    %1061 = vmatpush1.xpose.msra.mxu0 0.0
    %1062 = vmatprep.subr.mxu0 0.0
    %1063 = vmatpush1.xpose.msra.mxu0 0.0
    %1064 = vmatprep.subr.mxu0 0.0
    %1065 = vmatpush1.xpose.msra.mxu0 0.0
    %1066 = vmatprep.subr.mxu0 0.0
    %1067 = vmatpush1.xpose.msra.mxu0 0.0
    %1068 = vmatprep.subr.mxu0 0.0
    %1069 = vmatpush1.xpose.msra.mxu0 0.0
    %1070 = vmatprep.subr.mxu0 0.0
    %1071 = vmatpush1.xpose.msra.mxu0 0.0
    %1072 = vmatprep.subr.mxu0 0.0
    %1073 = vmatpush1.xpose.msra.mxu0 0.0
    %1074 = vmatprep.subr.mxu0 0.0
    %1075 = vmatpush1.xpose.msra.mxu0 0.0
    %1076 = vmatprep.subr.mxu0 0.0
    %1077 = vmatpush1.xpose.msra.mxu0 0.0
    %1078 = vmatprep.subr.mxu0 0.0
    %1079 = vmatpush1.xpose.msra.mxu0 0.0
    %1080 = vmatprep.subr.mxu0 0.0
    %1081 = vmatpush1.xpose.msra.mxu0 %v172
    %1082 = vmatprep.subr.mxu0 0.0
    %1083 = vmatpush1.xpose.msra.mxu0 %v170
    %1084 = vmatprep.subr.mxu0 0.0
    %1085 = vmatpush1.xpose.msra.mxu0 %v168
    %1086 = vmatprep.subr.mxu0 0.0
    %1087 = vmatpush1.xpose.msra.mxu0 %v166
    %1088 = vmatprep.subr.mxu0 0.0
    %1089 = vmatpush2.xpose.msra.mxu0 0.0
    %1090 = vmatprep.subr.mxu0 0.0
    %1091 = vmatpush2.xpose.msra.mxu0 0.0
    %1092 = vmatprep.subr.mxu0 0.0
    %1093 = vmatpush2.xpose.msra.mxu0 0.0
    %1094 = vmatprep.subr.mxu0 0.0
    %1095 = vmatpush2.xpose.msra.mxu0 0.0
    %1096 = vmatprep.subr.mxu0 0.0
    %1097 = vmatpush2.xpose.msra.mxu0 0.0
    %1098 = vmatprep.subr.mxu0 0.0
    %1099 = vmatpush2.xpose.msra.mxu0 0.0
    %1100 = vmatprep.subr.mxu0 0.0
    %1101 = vmatpush2.xpose.msra.mxu0 0.0
    %1102 = vmatprep.subr.mxu0 0.0
    %1103 = vmatpush2.xpose.msra.mxu0 0.0
    %1104 = vmatprep.subr.mxu0 0.0
    %1105 = vmatpush2.xpose.msra.mxu0 0.0
    %1106 = vmatprep.subr.mxu0 0.0
    %1107 = vmatpush2.xpose.msra.mxu0 0.0
    %1108 = vmatprep.subr.mxu0 0.0
    %1109 = vmatpush2.xpose.msra.mxu0 0.0
    %1110 = vmatprep.subr.mxu0 0.0
    %1111 = vmatpush2.xpose.msra.mxu0 0.0
    %1112 = vmatprep.subr.mxu0 0.0
    %1113 = vmatpush2.xpose.msra.mxu0 0.0
    %1114 = vmatprep.subr.mxu0 0.0
    %1115 = vmatpush2.xpose.msra.mxu0 0.0
    %1116 = vmatprep.subr.mxu0 0.0
    %1117 = vmatpush2.xpose.msra.mxu0 0.0
    %1118 = vmatprep.subr.mxu0 0.0
    %1119 = vmatpush2.xpose.msra.mxu0 0.0
    %1120 = vmatprep.mubr.f32.mxu0 0.0
    %1121 = vmatmul.mubr.f32.gmra.mxu0 %v1054
    %v1122 = vpop.f32.mrf.mxu0
    %v1123 = vadd.f32 0.0, %v1122
    %v1124 = vpop.f32.mrf.mxu0
    %1125 = vdwg.mxu0
    %v1126 = vadd.f32 %v1051, %v1123
    %v1127 = vxor.u32 %v1126, 2147483648
    %v1128 = vmul.f32 %v1127, 1.442695
    %v1129 = vpow.pop %v1128
    %v1130 = vadd.f32 %v1129, 1.0
    %v1131 = vrcp.pop %v1130
    %v1132 = vmul.f32 1.0, %v1131
    %v1133 = vtanh.pop %v1126
    %v1134 = vadd.f32 %v959, %v1133
    %v1135 = vmul.f32 %v1134, %v1132
    %v1136 = vtanh.pop %v1135
    %v1137 = vmul.f32 %v1136, %v1132
    %v1139 = vrot.slane %v1137, 1
    %1140 = vrot.lane.b32.xlu0 %v1139, 32
    %v1141 = vpop.permute.xlu0 %1140
    %v1143 = vrot.slane %v1137, 2
    %1144 = vrot.lane.b32.xlu0 %v1143, 64
    %v1145 = vpop.permute.xlu0 %1144
    %v1147 = vrot.slane %v1137, 3
    %1148 = vrot.lane.b32.xlu0 %v1147, 96
    %v1149 = vpop.permute.xlu0 %1148
    %v1151 = vsel %vm162, %v1137, %v1141
    %v1152 = vsel %vm270, %v1151, %v1145
    %v1153 = vsel %vm272, %v1152, %v1149
    %1154 = vst [vmem:[#allocation9 + $0x5] sm:$0x1] %v1153
    %s1155 = scalar_lea.vmem [#allocation4], 24
    %v1156 = vld [vmem:[%s1155] sm:$0xf]
    %v1158 = vsel %vm68, %v1156, 0
    %1160 = vmatprep.subr.mxu0 0.0
    %1161 = vmatpush1.xpose.msra.mxu0 0.0
    %1162 = vmatprep.subr.mxu0 0.0
    %1163 = vmatpush1.xpose.msra.mxu0 0.0
    %1164 = vmatprep.subr.mxu0 0.0
    %1165 = vmatpush1.xpose.msra.mxu0 0.0
    %1166 = vmatprep.subr.mxu0 0.0
    %1167 = vmatpush1.xpose.msra.mxu0 0.0
    %1168 = vmatprep.subr.mxu0 0.0
    %1169 = vmatpush1.xpose.msra.mxu0 0.0
    %1170 = vmatprep.subr.mxu0 0.0
    %1171 = vmatpush1.xpose.msra.mxu0 0.0
    %1172 = vmatprep.subr.mxu0 0.0
    %1173 = vmatpush1.xpose.msra.mxu0 0.0
    %1174 = vmatprep.subr.mxu0 0.0
    %1175 = vmatpush1.xpose.msra.mxu0 0.0
    %1176 = vmatprep.subr.mxu0 0.0
    %1177 = vmatpush1.xpose.msra.mxu0 0.0
    %1178 = vmatprep.subr.mxu0 0.0
    %1179 = vmatpush1.xpose.msra.mxu0 0.0
    %1180 = vmatprep.subr.mxu0 0.0
    %1181 = vmatpush1.xpose.msra.mxu0 0.0
    %1182 = vmatprep.subr.mxu0 0.0
    %1183 = vmatpush1.xpose.msra.mxu0 0.0
    %1184 = vmatprep.subr.mxu0 0.0
    %1185 = vmatpush1.xpose.msra.mxu0 %v82
    %1186 = vmatprep.subr.mxu0 0.0
    %1187 = vmatpush1.xpose.msra.mxu0 %v79
    %1188 = vmatprep.subr.mxu0 0.0
    %1189 = vmatpush1.xpose.msra.mxu0 %v76
    %1190 = vmatprep.subr.mxu0 0.0
    %1191 = vmatpush1.xpose.msra.mxu0 %v73
    %1192 = vmatprep.subr.mxu0 0.0
    %1193 = vmatpush2.xpose.msra.mxu0 0.0
    %1194 = vmatprep.subr.mxu0 0.0
    %1195 = vmatpush2.xpose.msra.mxu0 0.0
    %1196 = vmatprep.subr.mxu0 0.0
    %1197 = vmatpush2.xpose.msra.mxu0 0.0
    %1198 = vmatprep.subr.mxu0 0.0
    %1199 = vmatpush2.xpose.msra.mxu0 0.0
    %1200 = vmatprep.subr.mxu0 0.0
    %1201 = vmatpush2.xpose.msra.mxu0 0.0
    %1202 = vmatprep.subr.mxu0 0.0
    %1203 = vmatpush2.xpose.msra.mxu0 0.0
    %1204 = vmatprep.subr.mxu0 0.0
    %1205 = vmatpush2.xpose.msra.mxu0 0.0
    %1206 = vmatprep.subr.mxu0 0.0
    %1207 = vmatpush2.xpose.msra.mxu0 0.0
    %1208 = vmatprep.subr.mxu0 0.0
    %1209 = vmatpush2.xpose.msra.mxu0 0.0
    %1210 = vmatprep.subr.mxu0 0.0
    %1211 = vmatpush2.xpose.msra.mxu0 0.0
    %1212 = vmatprep.subr.mxu0 0.0
    %1213 = vmatpush2.xpose.msra.mxu0 0.0
    %1214 = vmatprep.subr.mxu0 0.0
    %1215 = vmatpush2.xpose.msra.mxu0 0.0
    %1216 = vmatprep.subr.mxu0 0.0
    %1217 = vmatpush2.xpose.msra.mxu0 0.0
    %1218 = vmatprep.subr.mxu0 0.0
    %1219 = vmatpush2.xpose.msra.mxu0 0.0
    %1220 = vmatprep.subr.mxu0 0.0
    %1221 = vmatpush2.xpose.msra.mxu0 0.0
    %1222 = vmatprep.subr.mxu0 0.0
    %1223 = vmatpush2.xpose.msra.mxu0 0.0
    %1224 = vmatprep.mubr.f32.mxu0 0.0
    %1225 = vmatmul.mubr.f32.gmra.mxu0 %v1158
    %v1226 = vpop.f32.mrf.mxu0
    %v1227 = vadd.f32 %v66, %v1226
    %v1228 = vpop.f32.mrf.mxu0
    %1229 = vdwg.mxu0
    %v1230 = vsel %vm162, %v1137, 0
    %1232 = vmatprep.subr.mxu0 0.0
    %1233 = vmatpush1.xpose.msra.mxu0 0.0
    %1234 = vmatprep.subr.mxu0 0.0
    %1235 = vmatpush1.xpose.msra.mxu0 0.0
    %1236 = vmatprep.subr.mxu0 0.0
    %1237 = vmatpush1.xpose.msra.mxu0 0.0
    %1238 = vmatprep.subr.mxu0 0.0
    %1239 = vmatpush1.xpose.msra.mxu0 0.0
    %1240 = vmatprep.subr.mxu0 0.0
    %1241 = vmatpush1.xpose.msra.mxu0 0.0
    %1242 = vmatprep.subr.mxu0 0.0
    %1243 = vmatpush1.xpose.msra.mxu0 0.0
    %1244 = vmatprep.subr.mxu0 0.0
    %1245 = vmatpush1.xpose.msra.mxu0 0.0
    %1246 = vmatprep.subr.mxu0 0.0
    %1247 = vmatpush1.xpose.msra.mxu0 0.0
    %1248 = vmatprep.subr.mxu0 0.0
    %1249 = vmatpush1.xpose.msra.mxu0 0.0
    %1250 = vmatprep.subr.mxu0 0.0
    %1251 = vmatpush1.xpose.msra.mxu0 0.0
    %1252 = vmatprep.subr.mxu0 0.0
    %1253 = vmatpush1.xpose.msra.mxu0 0.0
    %1254 = vmatprep.subr.mxu0 0.0
    %1255 = vmatpush1.xpose.msra.mxu0 0.0
    %1256 = vmatprep.subr.mxu0 0.0
    %1257 = vmatpush1.xpose.msra.mxu0 %v172
    %1258 = vmatprep.subr.mxu0 0.0
    %1259 = vmatpush1.xpose.msra.mxu0 %v170
    %1260 = vmatprep.subr.mxu0 0.0
    %1261 = vmatpush1.xpose.msra.mxu0 %v168
    %1262 = vmatprep.subr.mxu0 0.0
    %1263 = vmatpush1.xpose.msra.mxu0 %v166
    %1264 = vmatprep.subr.mxu0 0.0
    %1265 = vmatpush2.xpose.msra.mxu0 0.0
    %1266 = vmatprep.subr.mxu0 0.0
    %1267 = vmatpush2.xpose.msra.mxu0 0.0
    %1268 = vmatprep.subr.mxu0 0.0
    %1269 = vmatpush2.xpose.msra.mxu0 0.0
    %1270 = vmatprep.subr.mxu0 0.0
    %1271 = vmatpush2.xpose.msra.mxu0 0.0
    %1272 = vmatprep.subr.mxu0 0.0
    %1273 = vmatpush2.xpose.msra.mxu0 0.0
    %1274 = vmatprep.subr.mxu0 0.0
    %1275 = vmatpush2.xpose.msra.mxu0 0.0
    %1276 = vmatprep.subr.mxu0 0.0
    %1277 = vmatpush2.xpose.msra.mxu0 0.0
    %1278 = vmatprep.subr.mxu0 0.0
    %1279 = vmatpush2.xpose.msra.mxu0 0.0
    %1280 = vmatprep.subr.mxu0 0.0
    %1281 = vmatpush2.xpose.msra.mxu0 0.0
    %1282 = vmatprep.subr.mxu0 0.0
    %1283 = vmatpush2.xpose.msra.mxu0 0.0
    %1284 = vmatprep.subr.mxu0 0.0
    %1285 = vmatpush2.xpose.msra.mxu0 0.0
    %1286 = vmatprep.subr.mxu0 0.0
    %1287 = vmatpush2.xpose.msra.mxu0 0.0
    %1288 = vmatprep.subr.mxu0 0.0
    %1289 = vmatpush2.xpose.msra.mxu0 0.0
    %1290 = vmatprep.subr.mxu0 0.0
    %1291 = vmatpush2.xpose.msra.mxu0 0.0
    %1292 = vmatprep.subr.mxu0 0.0
    %1293 = vmatpush2.xpose.msra.mxu0 0.0
    %1294 = vmatprep.subr.mxu0 0.0
    %1295 = vmatpush2.xpose.msra.mxu0 0.0
    %1296 = vmatprep.mubr.f32.mxu0 0.0
    %1297 = vmatmul.mubr.f32.gmra.mxu0 %v1230
    %v1298 = vpop.f32.mrf.mxu0
    %v1299 = vadd.f32 0.0, %v1298
    %v1300 = vpop.f32.mrf.mxu0
    %1301 = vdwg.mxu0
    %v1302 = vadd.f32 %v1227, %v1299
    %v1303 = vxor.u32 %v1302, 2147483648
    %v1304 = vmul.f32 %v1303, 1.442695
    %v1305 = vpow.pop %v1304
    %v1306 = vadd.f32 %v1305, 1.0
    %v1307 = vrcp.pop %v1306
    %v1308 = vmul.f32 1.0, %v1307
    %v1309 = vtanh.pop %v1302
    %v1310 = vadd.f32 %v1135, %v1309
    %v1311 = vmul.f32 %v1310, %v1308
    %v1312 = vtanh.pop %v1311
    %v1313 = vmul.f32 %v1312, %v1308
    %v1315 = vrot.slane %v1313, 1
    %1316 = vrot.lane.b32.xlu0 %v1315, 32
    %v1317 = vpop.permute.xlu0 %1316
    %v1319 = vrot.slane %v1313, 2
    %1320 = vrot.lane.b32.xlu0 %v1319, 64
    %v1321 = vpop.permute.xlu0 %1320
    %v1323 = vrot.slane %v1313, 3
    %1324 = vrot.lane.b32.xlu0 %v1323, 96
    %v1325 = vpop.permute.xlu0 %1324
    %v1327 = vsel %vm162, %v1313, %v1317
    %v1328 = vsel %vm270, %v1327, %v1321
    %v1329 = vsel %vm272, %v1328, %v1325
    %1330 = vst [vmem:[#allocation9 + $0x6] sm:$0x1] %v1329
    %s1331 = scalar_lea.vmem [#allocation4], 28
    %v1332 = vld [vmem:[%s1331] sm:$0xf]
    %v1334 = vsel %vm68, %v1332, 0
    %1336 = vmatprep.subr.mxu0 0.0
    %1337 = vmatpush1.xpose.msra.mxu0 0.0
    %1338 = vmatprep.subr.mxu0 0.0
    %1339 = vmatpush1.xpose.msra.mxu0 0.0
    %1340 = vmatprep.subr.mxu0 0.0
    %1341 = vmatpush1.xpose.msra.mxu0 0.0
    %1342 = vmatprep.subr.mxu0 0.0
    %1343 = vmatpush1.xpose.msra.mxu0 0.0
    %1344 = vmatprep.subr.mxu0 0.0
    %1345 = vmatpush1.xpose.msra.mxu0 0.0
    %1346 = vmatprep.subr.mxu0 0.0
    %1347 = vmatpush1.xpose.msra.mxu0 0.0
    %1348 = vmatprep.subr.mxu0 0.0
    %1349 = vmatpush1.xpose.msra.mxu0 0.0
    %1350 = vmatprep.subr.mxu0 0.0
    %1351 = vmatpush1.xpose.msra.mxu0 0.0
    %1352 = vmatprep.subr.mxu0 0.0
    %1353 = vmatpush1.xpose.msra.mxu0 0.0
    %1354 = vmatprep.subr.mxu0 0.0
    %1355 = vmatpush1.xpose.msra.mxu0 0.0
    %1356 = vmatprep.subr.mxu0 0.0
    %1357 = vmatpush1.xpose.msra.mxu0 0.0
    %1358 = vmatprep.subr.mxu0 0.0
    %1359 = vmatpush1.xpose.msra.mxu0 0.0
    %1360 = vmatprep.subr.mxu0 0.0
    %1361 = vmatpush1.xpose.msra.mxu0 %v82
    %1362 = vmatprep.subr.mxu0 0.0
    %1363 = vmatpush1.xpose.msra.mxu0 %v79
    %1364 = vmatprep.subr.mxu0 0.0
    %1365 = vmatpush1.xpose.msra.mxu0 %v76
    %1366 = vmatprep.subr.mxu0 0.0
    %1367 = vmatpush1.xpose.msra.mxu0 %v73
    %1368 = vmatprep.subr.mxu0 0.0
    %1369 = vmatpush2.xpose.msra.mxu0 0.0
    %1370 = vmatprep.subr.mxu0 0.0
    %1371 = vmatpush2.xpose.msra.mxu0 0.0
    %1372 = vmatprep.subr.mxu0 0.0
    %1373 = vmatpush2.xpose.msra.mxu0 0.0
    %1374 = vmatprep.subr.mxu0 0.0
    %1375 = vmatpush2.xpose.msra.mxu0 0.0
    %1376 = vmatprep.subr.mxu0 0.0
    %1377 = vmatpush2.xpose.msra.mxu0 0.0
    %1378 = vmatprep.subr.mxu0 0.0
    %1379 = vmatpush2.xpose.msra.mxu0 0.0
    %1380 = vmatprep.subr.mxu0 0.0
    %1381 = vmatpush2.xpose.msra.mxu0 0.0
    %1382 = vmatprep.subr.mxu0 0.0
    %1383 = vmatpush2.xpose.msra.mxu0 0.0
    %1384 = vmatprep.subr.mxu0 0.0
    %1385 = vmatpush2.xpose.msra.mxu0 0.0
    %1386 = vmatprep.subr.mxu0 0.0
    %1387 = vmatpush2.xpose.msra.mxu0 0.0
    %1388 = vmatprep.subr.mxu0 0.0
    %1389 = vmatpush2.xpose.msra.mxu0 0.0
    %1390 = vmatprep.subr.mxu0 0.0
    %1391 = vmatpush2.xpose.msra.mxu0 0.0
    %1392 = vmatprep.subr.mxu0 0.0
    %1393 = vmatpush2.xpose.msra.mxu0 0.0
    %1394 = vmatprep.subr.mxu0 0.0
    %1395 = vmatpush2.xpose.msra.mxu0 0.0
    %1396 = vmatprep.subr.mxu0 0.0
    %1397 = vmatpush2.xpose.msra.mxu0 0.0
    %1398 = vmatprep.subr.mxu0 0.0
    %1399 = vmatpush2.xpose.msra.mxu0 0.0
    %1400 = vmatprep.mubr.f32.mxu0 0.0
    %1401 = vmatmul.mubr.f32.gmra.mxu0 %v1334
    %v1402 = vpop.f32.mrf.mxu0
    %v1403 = vadd.f32 %v66, %v1402
    %v1404 = vpop.f32.mrf.mxu0
    %1405 = vdwg.mxu0
    %v1406 = vsel %vm162, %v1313, 0
    %1408 = vmatprep.subr.mxu0 0.0
    %1409 = vmatpush1.xpose.msra.mxu0 0.0
    %1410 = vmatprep.subr.mxu0 0.0
    %1411 = vmatpush1.xpose.msra.mxu0 0.0
    %1412 = vmatprep.subr.mxu0 0.0
    %1413 = vmatpush1.xpose.msra.mxu0 0.0
    %1414 = vmatprep.subr.mxu0 0.0
    %1415 = vmatpush1.xpose.msra.mxu0 0.0
    %1416 = vmatprep.subr.mxu0 0.0
    %1417 = vmatpush1.xpose.msra.mxu0 0.0
    %1418 = vmatprep.subr.mxu0 0.0
    %1419 = vmatpush1.xpose.msra.mxu0 0.0
    %1420 = vmatprep.subr.mxu0 0.0
    %1421 = vmatpush1.xpose.msra.mxu0 0.0
    %1422 = vmatprep.subr.mxu0 0.0
    %1423 = vmatpush1.xpose.msra.mxu0 0.0
    %1424 = vmatprep.subr.mxu0 0.0
    %1425 = vmatpush1.xpose.msra.mxu0 0.0
    %1426 = vmatprep.subr.mxu0 0.0
    %1427 = vmatpush1.xpose.msra.mxu0 0.0
    %1428 = vmatprep.subr.mxu0 0.0
    %1429 = vmatpush1.xpose.msra.mxu0 0.0
    %1430 = vmatprep.subr.mxu0 0.0
    %1431 = vmatpush1.xpose.msra.mxu0 0.0
    %1432 = vmatprep.subr.mxu0 0.0
    %1433 = vmatpush1.xpose.msra.mxu0 %v172
    %1434 = vmatprep.subr.mxu0 0.0
    %1435 = vmatpush1.xpose.msra.mxu0 %v170
    %1436 = vmatprep.subr.mxu0 0.0
    %1437 = vmatpush1.xpose.msra.mxu0 %v168
    %1438 = vmatprep.subr.mxu0 0.0
    %1439 = vmatpush1.xpose.msra.mxu0 %v166
    %1440 = vmatprep.subr.mxu0 0.0
    %1441 = vmatpush2.xpose.msra.mxu0 0.0
    %1442 = vmatprep.subr.mxu0 0.0
    %1443 = vmatpush2.xpose.msra.mxu0 0.0
    %1444 = vmatprep.subr.mxu0 0.0
    %1445 = vmatpush2.xpose.msra.mxu0 0.0
    %1446 = vmatprep.subr.mxu0 0.0
    %1447 = vmatpush2.xpose.msra.mxu0 0.0
    %1448 = vmatprep.subr.mxu0 0.0
    %1449 = vmatpush2.xpose.msra.mxu0 0.0
    %1450 = vmatprep.subr.mxu0 0.0
    %1451 = vmatpush2.xpose.msra.mxu0 0.0
    %1452 = vmatprep.subr.mxu0 0.0
    %1453 = vmatpush2.xpose.msra.mxu0 0.0
    %1454 = vmatprep.subr.mxu0 0.0
    %1455 = vmatpush2.xpose.msra.mxu0 0.0
    %1456 = vmatprep.subr.mxu0 0.0
    %1457 = vmatpush2.xpose.msra.mxu0 0.0
    %1458 = vmatprep.subr.mxu0 0.0
    %1459 = vmatpush2.xpose.msra.mxu0 0.0
    %1460 = vmatprep.subr.mxu0 0.0
    %1461 = vmatpush2.xpose.msra.mxu0 0.0
    %1462 = vmatprep.subr.mxu0 0.0
    %1463 = vmatpush2.xpose.msra.mxu0 0.0
    %1464 = vmatprep.subr.mxu0 0.0
    %1465 = vmatpush2.xpose.msra.mxu0 0.0
    %1466 = vmatprep.subr.mxu0 0.0
    %1467 = vmatpush2.xpose.msra.mxu0 0.0
    %1468 = vmatprep.subr.mxu0 0.0
    %1469 = vmatpush2.xpose.msra.mxu0 0.0
    %1470 = vmatprep.subr.mxu0 0.0
    %1471 = vmatpush2.xpose.msra.mxu0 0.0
    %1472 = vmatprep.mubr.f32.mxu0 0.0
    %1473 = vmatmul.mubr.f32.gmra.mxu0 %v1406
    %v1474 = vpop.f32.mrf.mxu0
    %v1475 = vadd.f32 0.0, %v1474
    %v1476 = vpop.f32.mrf.mxu0
    %1477 = vdwg.mxu0
    %v1478 = vadd.f32 %v1403, %v1475
    %v1479 = vxor.u32 %v1478, 2147483648
    %v1480 = vmul.f32 %v1479, 1.442695
    %v1481 = vpow.pop %v1480
    %v1482 = vadd.f32 %v1481, 1.0
    %v1483 = vrcp.pop %v1482
    %v1484 = vmul.f32 1.0, %v1483
    %v1485 = vtanh.pop %v1478
    %v1486 = vadd.f32 %v1311, %v1485
    %v1487 = vmul.f32 %v1486, %v1484
    %v1488 = vtanh.pop %v1487
    %v1489 = vmul.f32 %v1488, %v1484
    %v1491 = vrot.slane %v1489, 1
    %1492 = vrot.lane.b32.xlu0 %v1491, 32
    %v1493 = vpop.permute.xlu0 %1492
    %v1495 = vrot.slane %v1489, 2
    %1496 = vrot.lane.b32.xlu0 %v1495, 64
    %v1497 = vpop.permute.xlu0 %1496
    %v1499 = vrot.slane %v1489, 3
    %1500 = vrot.lane.b32.xlu0 %v1499, 96
    %v1501 = vpop.permute.xlu0 %1500
    %v1503 = vsel %vm162, %v1489, %v1493
    %v1504 = vsel %vm270, %v1503, %v1497
    %v1505 = vsel %vm272, %v1504, %v1501
    %1506 = vst [vmem:[#allocation9 + $0x7] sm:$0x1] %v1505
    %vm1507 = vcmask 257024
    %1508 = vst.msk [vmem:[#allocation2] sm:$0xf] %vm1507, %v1489
    %1509 = vst.msk [vmem:[#allocation3] sm:$0xf] %vm1507, %v1487
    // Predicated region
    $region26: #{tpu_custom_call.1} parent=1 // pred_check
      %p1510 = pneg %p47
    $region27: #{tpu_custom_call.1} parent=1 // pred_check_branch
      %1512 = sbr.rel (%p1510) target = $region29
    $region28: #{tpu_custom_call.1} parent=1 // pred_region
      %1513 = vst.msk [vmem:[#allocation10] sm:$0xf] %vm1507, %v1489
      %1514 = vst.msk [vmem:[#allocation12] sm:$0xf] %vm1507, %v1487
    $region29: #{tpu_custom_call.1} parent=1 // pred_fallthru
      _
    // Predicated region
    $region30: #{tpu_custom_call.1} parent=1 // pred_check
      _
    $region31: #{tpu_custom_call.1} parent=1 // pred_check_branch
      %1516 = sbr.rel (0) target = $region33
    $region32: #{tpu_custom_call.1} parent=1 // pred_region
      %s1518 = ssub.s32 128, 128
      %1519 = vsyncadd [#allocation6], %s1518
      %s1521 = sshll.u32 [#allocation9], 4
      %s1522 = int_to_ptr.vmem [resolvable:$true] %s1521
      %1524 = dma.vmem_to_hbm [thread:$0]  %s1522, 128, %s3, [#allocation6]
    $region33: #{tpu_custom_call.1} parent=1 // pred_fallthru
      _
    // Predicated region
    $region34: #{tpu_custom_call.1} parent=1 // pred_check
      _
    $region35: #{tpu_custom_call.1} parent=1 // pred_check_branch
      %1526 = sbr.rel (0) target = $region37
    $region36: #{tpu_custom_call.1} parent=1 // pred_region
      %s1528 = ssub.s32 64, 64
      %1529 = vsyncadd [#allocation11], %s1528
      %s1531 = sshll.u32 [#allocation10], 4
      %s1532 = int_to_ptr.vmem [resolvable:$true] %s1531
      %1534 = dma.vmem_to_hbm [thread:$0]  %s1532, 64, %s4, [#allocation11]
    $region37: #{tpu_custom_call.1} parent=1 // pred_fallthru
      _
    // Predicated region
    $region38: #{tpu_custom_call.1} parent=1 // pred_check
      _
    $region39: #{tpu_custom_call.1} parent=1 // pred_check_branch
      %1536 = sbr.rel (0) target = $region41
    $region40: #{tpu_custom_call.1} parent=1 // pred_region
      %s1538 = ssub.s32 64, 64
      %1539 = vsyncadd [#allocation11], %s1538
      %s1541 = sshll.u32 [#allocation12], 4
      %s1542 = int_to_ptr.vmem [resolvable:$true] %s1541
      %1544 = dma.vmem_to_hbm [thread:$0]  %s1542, 64, %s5, [#allocation11]
    $region41: #{tpu_custom_call.1} parent=1 // pred_fallthru
      _
    // Predicated region
    $region42: #{tpu_custom_call.1} parent=1 // pred_check
      _
    $region43: #{tpu_custom_call.1} parent=1 // pred_check_branch
      %1546 = sbr.rel (0) target = $region45
    $region44: #{tpu_custom_call.1} parent=1 // pred_region
      %1547 = dma.done [#allocation6], 128
    $region45: #{tpu_custom_call.1} parent=1 // pred_fallthru
      _
    // Predicated region
    $region46: #{tpu_custom_call.1} parent=1 // pred_check
      _
    $region47: #{tpu_custom_call.1} parent=1 // pred_check_branch
      %1549 = sbr.rel (0) target = $region49
    $region48: #{tpu_custom_call.1} parent=1 // pred_region
      %1550 = dma.done [#allocation11], 64
    $region49: #{tpu_custom_call.1} parent=1 // pred_fallthru
      _
    // Predicated region
    $region50: #{tpu_custom_call.1} parent=1 // pred_check
      _
    $region51: #{tpu_custom_call.1} parent=1 // pred_check_branch
      %1552 = sbr.rel (0) target = $region53
    $region52: #{tpu_custom_call.1} parent=1 // pred_region
      %1553 = dma.done [#allocation11], 64
    $region53: #{tpu_custom_call.1} parent=1 // pred_fallthru
      _
    %1554 = vsyncpa [#allocation5], 1
    %1555 = vsyncpa [#allocation8], 1
    %1556 = vsyncpa [#allocation6], 1
    %1557 = vsyncpa [#allocation11], 1

</llo_original>
